<compile_context>
chip_gen: v6e
topology: v6e:2x2x1
jax: 0.10.0
libtpu: 0.0.40
codegen_flags: <defaults>
</compile_context>

<pallas_src>
import numpy as np
import jax
import jax.numpy as jnp
from jax.experimental import pallas as pl
from jax.experimental.pallas import tpu as pltpu

LANE = 128
NUM_CLASSES = 2
F1I, F1O = 25, 16          # conv1: PNAConv(25 -> 16)
F2I, F2O = 16, 8           # conv2: PNAConv(16 -> 8)
AGGS = ("mean", "min", "max", "std")


def _round8(n):
    return max(8, (n + 7) & ~7)


K1, K2 = _round8(F1I), _round8(F2I)     # padded K (rows) of conv1 / conv2 weight blocks


def _w_layout():
    """Row layout of the packed [R, 128] weight slab (all blocks 8-row aligned)."""
    entries = []
    for c, kin, fo in ((1, K1, F1O), (2, K2, F2O)):
        entries += [(f"wpre_i{c}", kin), (f"wpre_j{c}", kin), (f"bpre{c}", 8),
                    (f"wx{c}", kin)]
        entries += [(f"w{a}{c}", kin) for a in AGGS]
        entries += [(f"bpost{c}", 8), (f"wlin{c}", _round8(fo)), (f"blin{c}", 8)]
    entries += [("wfc", 8), ("bfc", 8)]
    off, r = {}, 0
    for name, rows in entries:
        off[name] = (r, rows)
        r += rows
    return off, r


WOFF, WROWS = _w_layout()


def _make_kernel(meta):
    n = meta["n_pad"]
    b = meta["b_pad"]
    deg_max = meta["deg_max"]
    goff = meta["goff"]
    avg_log = meta["avg_log"]
    inv_avg_log = 1.0 / avg_log

    def kernel(g_ref, w_ref, out_ref):
        f32 = jnp.float32

        def wblk(name):                      # static, 8-aligned weight slice
            r0, rows = WOFF[name]
            return w_ref[r0:r0 + rows, :]

        def wrow(name):                      # [1, 128] bias row (zero padded)
            r0, _ = WOFF[name]
            return w_ref[r0:r0 + 1, :]

        x = g_ref[goff["x"]:goff["x"] + n, :]                        # [N, 128]
        gsrc = g_ref[goff["gsrc"]:goff["gsrc"] + deg_max * n, 0:n]   # [deg_max*N, N]
        degf = g_ref[goff["deg"]:goff["deg"] + n, :]                 # [N, 128] lane-replicated deg
        pool = g_ref[goff["pool"]:goff["pool"] + b, 0:n]             # [B_pad, N]

        deg_c = jnp.maximum(degf, 1.0)               # degree(...).clamp_(1)
        inv_deg = 1.0 / deg_c                        # exact (per review)
        has_edge = degf > 0.5
        logd = jnp.log(deg_c + 1.0)
        amp = logd * inv_avg_log                     # amplification scaler
        att = avg_log / logd                         # attenuation scaler (exact)
        big = jnp.float32(1e30)

        def pna_conv(h, c, kin, fout):
            hk = h[:, 0:kin]
            # ---- message: pre_nn(cat([x_i, x_j], -1)); the x_i projection is shared
            #      by all in-edges of a node, so it is computed once per node.
            mi = (jnp.dot(hk, wblk(f"wpre_i{c}"), preferred_element_type=f32)
                  + wrow(f"bpre{c}"))                                       # [N, 128]
            mjn = jnp.dot(hk, wblk(f"wpre_j{c}"), preferred_element_type=f32)
            mj = jnp.dot(gsrc, mjn, preferred_element_type=f32)             # [deg_max*N, 128]
            # ---- slot-wise aggregation (deg_max small): mean / min / max / std ----
            s1 = jnp.zeros((n, LANE), f32)
            s2 = jnp.zeros((n, LANE), f32)
            mn = jnp.full((n, LANE), big, f32)
            mx = jnp.full((n, LANE), -big, f32)
            for d in range(deg_max):
                m_d = mi + mj[d * n:(d + 1) * n, :]          # aligned sublane slice
                valid = degf > (d + 0.5)
                s1 = s1 + jnp.where(valid, m_d, 0.0)
                s2 = s2 + jnp.where(valid, m_d * m_d, 0.0)
                mn = jnp.where(valid, jnp.minimum(mn, m_d), mn)
                mx = jnp.where(valid, jnp.maximum(mx, m_d), mx)
            mean = s1 * inv_deg
            var = s2 * inv_deg - mean * mean
            std = jnp.sqrt(jnp.maximum(var, 0.0) + 1e-5)     # PyG: sqrt(relu(var)+eps)
            mn = jnp.where(has_edge, mn, 0.0)
            mx = jnp.where(has_edge, mx, 0.0)
            # ---- post_nn: one dot for the x chunk + one per aggregator; each agg
            #      weight block packs [identity | amplification | attenuation] in the
            #      lane dim, so scalers are applied to [N, fout] sub-blocks after. ----
            d_acc = jnp.dot(hk, wblk(f"wx{c}"), preferred_element_type=f32)
            for name, a in (("mean", mean), ("min", mn), ("max", mx), ("std", std)):
                d_acc = d_acc + jnp.dot(a[:, 0:kin], wblk(f"w{name}{c}"),
                                        preferred_element_type=f32)
            post = (d_acc[:, 0:fout]
                    + amp[:, 0:fout] * d_acc[:, fout:2 * fout]
                    + att[:, 0:fout] * d_acc[:, 2 * fout:3 * fout]
                    + wrow(f"bpost{c}")[:, 0:fout])
            return (jnp.dot(post, wblk(f"wlin{c}"), preferred_element_type=f32)
                    + wrow(f"blin{c}"))                                     # [N, 128]

        h1 = jnp.maximum(pna_conv(x, 1, K1, F1O), 0.0)
        # TODO(synk): F.dropout is stochastic; treated as identity (inference mode).
        h2 = jnp.maximum(pna_conv(h1, 2, K2, F2O), 0.0)
        pooled = jnp.dot(pool, h2, preferred_element_type=f32)              # [B_pad, 128]
        logits = (jnp.dot(pooled[:, 0:F2O], wblk("wfc"), preferred_element_type=f32)
                  + wrow("bfc"))                                            # [B_pad, 128]
        # 2-class log_softmax on lanes 0/1; lanes >= 2 are junk, sliced off outside.
        l0 = logits[:, 0:1]
        l1 = logits[:, 1:2]
        m = jnp.maximum(l0, l1)
        lse = m + jnp.log(jnp.exp(l0 - m) + jnp.exp(l1 - m))
        out_ref[...] = logits - lse       # lane-dense, unmasked store

    return kernel


def gnn_forward(g_slab, w_buf, meta):
    kernel = _make_kernel(meta)
    out = pl.pallas_call(
        kernel,
        out_shape=jax.ShapeDtypeStruct((meta["b_pad"], LANE), jnp.float32),
        in_specs=[pl.BlockSpec(memory_space=pltpu.MemorySpace.VMEM)] * 2,
        out_specs=pl.BlockSpec(memory_space=pltpu.MemorySpace.VMEM),
    )(g_slab, w_buf)
    return out[:meta["num_graphs"], :NUM_CLASSES]


def prepare_graph(x, edge_index, batch, num_graphs):
    """One-time topology prep: pack node features, per-slot source one-hots, degree
    and the pooling matrix into a single [R, 128] f32 slab (one DMA)."""
    x = np.asarray(x, np.float32)
    n, fin = x.shape
    n_pad = _round8(n)
    b_pad = _round8(num_graphs)
    ei = np.asarray(edge_index)
    src, dst = ei[0], ei[1]
    indeg = np.bincount(dst, minlength=n).astype(np.int64)
    deg_max = max(1, int(indeg.max()) if dst.size else 1)

    # Bucket edges by target: slot d of node t holds the source of its d-th in-edge.
    gsrc = np.zeros((deg_max * n_pad, n_pad), np.float32)
    slot = np.zeros(n, np.int64)
    for e_idx in range(dst.shape[0]):
        t = int(dst[e_idx]); d = int(slot[t]); slot[t] += 1
        gsrc[d * n_pad + t, int(src[e_idx])] = 1.0

    degf = np.zeros((n_pad, LANE), np.float32)
    degf[:n, :] = indeg[:, None]

    pool = np.zeros((b_pad, n_pad), np.float32)
    pool[np.asarray(batch), np.arange(n)] = 1.0       # global_add_pool matrix [B, N]

    goff, r = {}, 0
    for name, rows in (("x", n_pad), ("gsrc", deg_max * n_pad),
                       ("deg", n_pad), ("pool", b_pad)):
        goff[name] = r
        r += rows
    g = np.zeros((r, LANE), np.float32)
    g[goff["x"]:goff["x"] + n, :fin] = x
    g[goff["gsrc"]:goff["gsrc"] + deg_max * n_pad, :n_pad] = gsrc
    g[goff["deg"]:goff["deg"] + n_pad, :] = degf
    g[goff["pool"]:goff["pool"] + b_pad, :n_pad] = pool

    # TODO(synk): the reference builds deg = torch.zeros(0) (max_degree = -1), which
    # makes PNAConv's avg_deg['log'] a 0/0; we use this graph's in-degree histogram
    # instead (guarded so it is always finite and positive).
    avg_log = float(np.mean(np.log(indeg.astype(np.float64) + 1.0)))
    if not np.isfinite(avg_log) or avg_log <= 0.0:
        avg_log = 1.0

    meta = dict(n_pad=n_pad, b_pad=b_pad, deg_max=deg_max, num_graphs=num_graphs,
                avg_log=avg_log, goff=goff)
    return jnp.asarray(g), meta


def _linear_init(key, fan_in, fan_out):
    kw, kb = jax.random.split(key)
    bound = 1.0 / np.sqrt(fan_in)
    w = jax.random.uniform(kw, (fan_in, fan_out), jnp.float32, -bound, bound)
    b = jax.random.uniform(kb, (1, fan_out), jnp.float32, -bound, bound)
    return np.asarray(w), np.asarray(b)


def make_params(key):
    """Build PNA weights and pack them into one compact [424, 128] f32 slab."""
    ks = jax.random.split(key, 7)
    # conv1: pre Linear(50,25), post Linear(13*25,16), lin Linear(16,16)
    wpre1, bpre1 = _linear_init(ks[0], 2 * F1I, F1I)
    wpost1, bpost1 = _linear_init(ks[1], 13 * F1I, F1O)
    wlin1, blin1 = _linear_init(ks[2], F1O, F1O)
    # conv2: pre Linear(32,16), post Linear(13*16,8), lin Linear(8,8)
    wpre2, bpre2 = _linear_init(ks[3], 2 * F2I, F2I)
    wpost2, bpost2 = _linear_init(ks[4], 13 * F2I, F2O)
    wlin2, blin2 = _linear_init(ks[5], F2O, F2O)
    # fc1: Linear(8, 2)
    wfc, bfc = _linear_init(ks[6], F2O, NUM_CLASSES)

    buf = np.zeros((WROWS, LANE), np.float32)

    def put(name, a):
        a = np.asarray(a, np.float32)
        r0, rows = WOFF[name]
        assert a.shape[0] <= rows and a.shape[1] <= LANE
        buf[r0:r0 + a.shape[0], :a.shape[1]] = a

    def put_post(c, wpost, fin, fout):
        # PyG post_nn chunk order: [x, (mean,min,max,std)_id, (...)_amp, (...)_atten].
        put(f"wx{c}", wpost[0:fin])
        for a_idx, a in enumerate(AGGS):
            blk = np.zeros((fin, 3 * fout), np.float32)
            blk[:, 0 * fout:1 * fout] = wpost[(1 + a_idx) * fin:(2 + a_idx) * fin]
            blk[:, 1 * fout:2 * fout] = wpost[(5 + a_idx) * fin:(6 + a_idx) * fin]
            blk[:, 2 * fout:3 * fout] = wpost[(9 + a_idx) * fin:(10 + a_idx) * fin]
            put(f"w{a}{c}", blk)

    put("wpre_i1", wpre1[:F1I]); put("wpre_j1", wpre1[F1I:]); put("bpre1", bpre1)
    put_post(1, wpost1, F1I, F1O); put("bpost1", bpost1)
    put("wlin1", wlin1); put("blin1", blin1)
    put("wpre_i2", wpre2[:F2I]); put("wpre_j2", wpre2[F2I:]); put("bpre2", bpre2)
    put_post(2, wpost2, F2I, F2O); put("bpost2", bpost2)
    put("wlin2", wlin2); put("blin2", blin2)
    put("wfc", wfc); put("bfc", bfc)
    return jnp.asarray(buf)


if __name__ == "__main__":
    key = jax.random.PRNGKey(0)
    kx, kp = jax.random.split(key)

    nodes_per_graph, num_graphs = 8, 2
    N = nodes_per_graph * num_graphs
    x = jax.random.normal(kx, (N, F1I), dtype=jnp.float32)

    # two ring graphs (bidirectional edges) -> every node has in-degree 2
    src, dst = [], []
    for gph in range(num_graphs):
        off = gph * nodes_per_graph
        for i in range(nodes_per_graph):
            j = (i + 1) % nodes_per_graph
            src += [off + i, off + j]
            dst += [off + j, off + i]
    edge_index = np.array([src, dst], dtype=np.int32)                 # [2, 32]
    batch = np.array(sum([[gph] * nodes_per_graph for gph in range(num_graphs)], []),
                     dtype=np.int32)                                  # [16]

    g_slab, meta = prepare_graph(np.asarray(x), edge_index, batch, num_graphs)
    w_buf = make_params(kp)

    out = gnn_forward(g_slab, w_buf, meta)
    out = jax.block_until_ready(out)
    assert out.shape == (num_graphs, NUM_CLASSES)
    assert bool(jnp.all(jnp.isfinite(out)))
    # log_softmax rows must exponentiate-sum to 1
    assert bool(jnp.allclose(jnp.sum(jnp.exp(out), axis=1), 1.0, atol=1e-3))
    print("KERNEL_OK")
</pallas_src>

<mosaic_0001>
module attributes {stable_mosaic.version = 11 : i64} {
  func.func @kernel(%arg0: memref<72x128xf32, #tpu.memory_space<vmem>>, %arg1: memref<424x128xf32, #tpu.memory_space<vmem>>, %arg2: memref<8x128xf32, #tpu.memory_space<vmem>>) attributes {dimension_semantics = [], scalar_prefetch = 0 : i64, scratch_operands = 0 : i64, tpu.core_type = #tpu.core_type<tc>} {
    %c0 = arith.constant 0 : index
    %c0_0 = arith.constant 0 : index
    %0 = vector.load %arg0[%c0, %c0_0] : memref<72x128xf32, #tpu.memory_space<vmem>>, vector<16x128xf32>
    %c16 = arith.constant 16 : index
    %c0_1 = arith.constant 0 : index
    %1 = vector.load %arg0[%c16, %c0_1] : memref<72x128xf32, #tpu.memory_space<vmem>>, vector<32x16xf32>
    %c48 = arith.constant 48 : index
    %c0_2 = arith.constant 0 : index
    %2 = vector.load %arg0[%c48, %c0_2] : memref<72x128xf32, #tpu.memory_space<vmem>>, vector<16x128xf32>
    %c64 = arith.constant 64 : index
    %c0_3 = arith.constant 0 : index
    %3 = vector.load %arg0[%c64, %c0_3] : memref<72x128xf32, #tpu.memory_space<vmem>>, vector<8x16xf32>
    %cst = arith.constant 1.000000e+00 : f32
    %4 = vector.broadcast %cst : f32 to vector<16x128xf32>
    %5 = arith.maximumf %2, %4 : vector<16x128xf32>
    %cst_4 = arith.constant 1.000000e+00 : f32
    %6 = vector.broadcast %cst_4 : f32 to vector<16x128xf32>
    %7 = arith.divf %6, %5 : vector<16x128xf32>
    %cst_5 = arith.constant 5.000000e-01 : f32
    %8 = vector.broadcast %cst_5 : f32 to vector<16x128xf32>
    %9 = arith.cmpf ogt, %2, %8 : vector<16x128xf32>
    %cst_6 = arith.constant 1.000000e+00 : f32
    %10 = vector.broadcast %cst_6 : f32 to vector<16x128xf32>
    %11 = arith.addf %5, %10 : vector<16x128xf32>
    %12 = math.log %11 : vector<16x128xf32>
    %cst_7 = arith.constant 0.910239219 : f32
    %13 = vector.broadcast %cst_7 : f32 to vector<16x128xf32>
    %14 = arith.mulf %12, %13 : vector<16x128xf32>
    %cst_8 = arith.constant 1.09861231 : f32
    %15 = vector.broadcast %cst_8 : f32 to vector<16x128xf32>
    %16 = arith.divf %15, %12 : vector<16x128xf32>
    %17 = vector.extract_strided_slice %0 {offsets = [0, 0], sizes = [16, 32], strides = [1, 1]} : vector<16x128xf32> to vector<16x32xf32>
    %c0_9 = arith.constant 0 : index
    %c0_10 = arith.constant 0 : index
    %18 = vector.load %arg1[%c0_9, %c0_10] : memref<424x128xf32, #tpu.memory_space<vmem>>, vector<32x128xf32>
    %cst_11 = arith.constant dense<0.000000e+00> : vector<16x128xf32>
    %19 = tpu.matmul %17, %18, %cst_11 {dimension_numbers = #tpu.dot_dimension_numbers<[1], [0], [0], [1], [0, 0, 1, 1], [], []>} : vector<16x32xf32>, vector<32x128xf32>, vector<16x128xf32> -> vector<16x128xf32>
    %c64_12 = arith.constant 64 : index
    %c0_13 = arith.constant 0 : index
    %20 = vector.load %arg1[%c64_12, %c0_13] : memref<424x128xf32, #tpu.memory_space<vmem>>, vector<1x128xf32>
    %21 = vector.broadcast %20 : vector<1x128xf32> to vector<16x128xf32>
    %22 = arith.addf %19, %21 : vector<16x128xf32>
    %c32 = arith.constant 32 : index
    %c0_14 = arith.constant 0 : index
    %23 = vector.load %arg1[%c32, %c0_14] : memref<424x128xf32, #tpu.memory_space<vmem>>, vector<32x128xf32>
    %cst_15 = arith.constant dense<0.000000e+00> : vector<16x128xf32>
    %24 = tpu.matmul %17, %23, %cst_15 {dimension_numbers = #tpu.dot_dimension_numbers<[1], [0], [0], [1], [0, 0, 1, 1], [], []>} : vector<16x32xf32>, vector<32x128xf32>, vector<16x128xf32> -> vector<16x128xf32>
    %cst_16 = arith.constant dense<0.000000e+00> : vector<32x128xf32>
    %25 = tpu.matmul %1, %24, %cst_16 {dimension_numbers = #tpu.dot_dimension_numbers<[1], [0], [0], [1], [0, 0, 1, 1], [], []>} : vector<32x16xf32>, vector<16x128xf32>, vector<32x128xf32> -> vector<32x128xf32>
    %cst_17 = arith.constant 0.000000e+00 : f32
    %26 = vector.broadcast %cst_17 : f32 to vector<16x128xf32>
    %cst_18 = arith.constant 0.000000e+00 : f32
    %27 = vector.broadcast %cst_18 : f32 to vector<16x128xf32>
    %cst_19 = arith.constant 1.000000e+30 : f32
    %28 = vector.broadcast %cst_19 : f32 to vector<16x128xf32>
    %cst_20 = arith.constant 0.000000e+00 : f32
    %cst_21 = arith.constant 1.000000e+30 : f32
    %29 = arith.subf %cst_20, %cst_21 : f32
    %30 = vector.broadcast %29 : f32 to vector<16x128xf32>
    %31 = vector.extract_strided_slice %25 {offsets = [0, 0], sizes = [16, 128], strides = [1, 1]} : vector<32x128xf32> to vector<16x128xf32>
    %32 = arith.addf %22, %31 : vector<16x128xf32>
    %cst_22 = arith.constant 5.000000e-01 : f32
    %33 = vector.broadcast %cst_22 : f32 to vector<16x128xf32>
    %34 = arith.cmpf ogt, %2, %33 : vector<16x128xf32>
    %cst_23 = arith.constant 0.000000e+00 : f32
    %35 = vector.broadcast %cst_23 : f32 to vector<16x128xf32>
    %36 = arith.select %34, %32, %35 : vector<16x128xi1>, vector<16x128xf32>
    %37 = arith.addf %26, %36 : vector<16x128xf32>
    %38 = arith.mulf %32, %32 : vector<16x128xf32>
    %cst_24 = arith.constant 0.000000e+00 : f32
    %39 = vector.broadcast %cst_24 : f32 to vector<16x128xf32>
    %40 = arith.select %34, %38, %39 : vector<16x128xi1>, vector<16x128xf32>
    %41 = arith.addf %27, %40 : vector<16x128xf32>
    %42 = arith.minimumf %28, %32 : vector<16x128xf32>
    %43 = arith.select %34, %42, %28 : vector<16x128xi1>, vector<16x128xf32>
    %44 = arith.maximumf %30, %32 : vector<16x128xf32>
    %45 = arith.select %34, %44, %30 : vector<16x128xi1>, vector<16x128xf32>
    %46 = vector.extract_strided_slice %25 {offsets = [16, 0], sizes = [16, 128], strides = [1, 1]} : vector<32x128xf32> to vector<16x128xf32>
    %47 = arith.addf %22, %46 : vector<16x128xf32>
    %cst_25 = arith.constant 1.500000e+00 : f32
    %48 = vector.broadcast %cst_25 : f32 to vector<16x128xf32>
    %49 = arith.cmpf ogt, %2, %48 : vector<16x128xf32>
    %cst_26 = arith.constant 0.000000e+00 : f32
    %50 = vector.broadcast %cst_26 : f32 to vector<16x128xf32>
    %51 = arith.select %49, %47, %50 : vector<16x128xi1>, vector<16x128xf32>
    %52 = arith.addf %37, %51 : vector<16x128xf32>
    %53 = arith.mulf %47, %47 : vector<16x128xf32>
    %cst_27 = arith.constant 0.000000e+00 : f32
    %54 = vector.broadcast %cst_27 : f32 to vector<16x128xf32>
    %55 = arith.select %49, %53, %54 : vector<16x128xi1>, vector<16x128xf32>
    %56 = arith.addf %41, %55 : vector<16x128xf32>
    %57 = arith.minimumf %43, %47 : vector<16x128xf32>
    %58 = arith.select %49, %57, %43 : vector<16x128xi1>, vector<16x128xf32>
    %59 = arith.maximumf %45, %47 : vector<16x128xf32>
    %60 = arith.select %49, %59, %45 : vector<16x128xi1>, vector<16x128xf32>
    %61 = arith.mulf %52, %7 : vector<16x128xf32>
    %62 = arith.mulf %56, %7 : vector<16x128xf32>
    %63 = arith.mulf %61, %61 : vector<16x128xf32>
    %64 = arith.subf %62, %63 : vector<16x128xf32>
    %cst_28 = arith.constant 0.000000e+00 : f32
    %65 = vector.broadcast %cst_28 : f32 to vector<16x128xf32>
    %66 = arith.maximumf %64, %65 : vector<16x128xf32>
    %cst_29 = arith.constant 9.99999974E-6 : f32
    %67 = vector.broadcast %cst_29 : f32 to vector<16x128xf32>
    %68 = arith.addf %66, %67 : vector<16x128xf32>
    %69 = math.sqrt %68 : vector<16x128xf32>
    %cst_30 = arith.constant 0.000000e+00 : f32
    %70 = vector.broadcast %cst_30 : f32 to vector<16x128xf32>
    %71 = arith.select %9, %58, %70 : vector<16x128xi1>, vector<16x128xf32>
    %cst_31 = arith.constant 0.000000e+00 : f32
    %72 = vector.broadcast %cst_31 : f32 to vector<16x128xf32>
    %73 = arith.select %9, %60, %72 : vector<16x128xi1>, vector<16x128xf32>
    %c72 = arith.constant 72 : index
    %c0_32 = arith.constant 0 : index
    %74 = vector.load %arg1[%c72, %c0_32] : memref<424x128xf32, #tpu.memory_space<vmem>>, vector<32x128xf32>
    %cst_33 = arith.constant dense<0.000000e+00> : vector<16x128xf32>
    %75 = tpu.matmul %17, %74, %cst_33 {dimension_numbers = #tpu.dot_dimension_numbers<[1], [0], [0], [1], [0, 0, 1, 1], [], []>} : vector<16x32xf32>, vector<32x128xf32>, vector<16x128xf32> -> vector<16x128xf32>
    %76 = vector.extract_strided_slice %61 {offsets = [0, 0], sizes = [16, 32], strides = [1, 1]} : vector<16x128xf32> to vector<16x32xf32>
    %c104 = arith.constant 104 : index
    %c0_34 = arith.constant 0 : index
    %77 = vector.load %arg1[%c104, %c0_34] : memref<424x128xf32, #tpu.memory_space<vmem>>, vector<32x128xf32>
    %cst_35 = arith.constant dense<0.000000e+00> : vector<16x128xf32>
    %78 = tpu.matmul %76, %77, %cst_35 {dimension_numbers = #tpu.dot_dimension_numbers<[1], [0], [0], [1], [0, 0, 1, 1], [], []>} : vector<16x32xf32>, vector<32x128xf32>, vector<16x128xf32> -> vector<16x128xf32>
    %79 = arith.addf %75, %78 : vector<16x128xf32>
    %80 = vector.extract_strided_slice %71 {offsets = [0, 0], sizes = [16, 32], strides = [1, 1]} : vector<16x128xf32> to vector<16x32xf32>
    %c136 = arith.constant 136 : index
    %c0_36 = arith.constant 0 : index
    %81 = vector.load %arg1[%c136, %c0_36] : memref<424x128xf32, #tpu.memory_space<vmem>>, vector<32x128xf32>
    %cst_37 = arith.constant dense<0.000000e+00> : vector<16x128xf32>
    %82 = tpu.matmul %80, %81, %cst_37 {dimension_numbers = #tpu.dot_dimension_numbers<[1], [0], [0], [1], [0, 0, 1, 1], [], []>} : vector<16x32xf32>, vector<32x128xf32>, vector<16x128xf32> -> vector<16x128xf32>
    %83 = arith.addf %79, %82 : vector<16x128xf32>
    %84 = vector.extract_strided_slice %73 {offsets = [0, 0], sizes = [16, 32], strides = [1, 1]} : vector<16x128xf32> to vector<16x32xf32>
    %c168 = arith.constant 168 : index
    %c0_38 = arith.constant 0 : index
    %85 = vector.load %arg1[%c168, %c0_38] : memref<424x128xf32, #tpu.memory_space<vmem>>, vector<32x128xf32>
    %cst_39 = arith.constant dense<0.000000e+00> : vector<16x128xf32>
    %86 = tpu.matmul %84, %85, %cst_39 {dimension_numbers = #tpu.dot_dimension_numbers<[1], [0], [0], [1], [0, 0, 1, 1], [], []>} : vector<16x32xf32>, vector<32x128xf32>, vector<16x128xf32> -> vector<16x128xf32>
    %87 = arith.addf %83, %86 : vector<16x128xf32>
    %88 = vector.extract_strided_slice %69 {offsets = [0, 0], sizes = [16, 32], strides = [1, 1]} : vector<16x128xf32> to vector<16x32xf32>
    %c200 = arith.constant 200 : index
    %c0_40 = arith.constant 0 : index
    %89 = vector.load %arg1[%c200, %c0_40] : memref<424x128xf32, #tpu.memory_space<vmem>>, vector<32x128xf32>
    %cst_41 = arith.constant dense<0.000000e+00> : vector<16x128xf32>
    %90 = tpu.matmul %88, %89, %cst_41 {dimension_numbers = #tpu.dot_dimension_numbers<[1], [0], [0], [1], [0, 0, 1, 1], [], []>} : vector<16x32xf32>, vector<32x128xf32>, vector<16x128xf32> -> vector<16x128xf32>
    %91 = arith.addf %87, %90 : vector<16x128xf32>
    %92 = vector.extract_strided_slice %91 {offsets = [0, 0], sizes = [16, 16], strides = [1, 1]} : vector<16x128xf32> to vector<16x16xf32>
    %93 = vector.extract_strided_slice %14 {offsets = [0, 0], sizes = [16, 16], strides = [1, 1]} : vector<16x128xf32> to vector<16x16xf32>
    %94 = vector.extract_strided_slice %91 {offsets = [0, 16], sizes = [16, 16], strides = [1, 1]} : vector<16x128xf32> to vector<16x16xf32>
    %95 = arith.mulf %93, %94 : vector<16x16xf32>
    %96 = arith.addf %92, %95 : vector<16x16xf32>
    %97 = vector.extract_strided_slice %16 {offsets = [0, 0], sizes = [16, 16], strides = [1, 1]} : vector<16x128xf32> to vector<16x16xf32>
    %98 = vector.extract_strided_slice %91 {offsets = [0, 32], sizes = [16, 16], strides = [1, 1]} : vector<16x128xf32> to vector<16x16xf32>
    %99 = arith.mulf %97, %98 : vector<16x16xf32>
    %100 = arith.addf %96, %99 : vector<16x16xf32>
    %c232 = arith.constant 232 : index
    %c0_42 = arith.constant 0 : index
    %101 = vector.load %arg1[%c232, %c0_42] : memref<424x128xf32, #tpu.memory_space<vmem>>, vector<1x128xf32>
    %102 = vector.extract_strided_slice %101 {offsets = [0, 0], sizes = [1, 16], strides = [1, 1]} : vector<1x128xf32> to vector<1x16xf32>
    %103 = vector.broadcast %102 : vector<1x16xf32> to vector<16x16xf32>
    %104 = arith.addf %100, %103 : vector<16x16xf32>
    %c240 = arith.constant 240 : index
    %c0_43 = arith.constant 0 : index
    %105 = vector.load %arg1[%c240, %c0_43] : memref<424x128xf32, #tpu.memory_space<vmem>>, vector<16x128xf32>
    %cst_44 = arith.constant dense<0.000000e+00> : vector<16x128xf32>
    %106 = tpu.matmul %104, %105, %cst_44 {dimension_numbers = #tpu.dot_dimension_numbers<[1], [0], [0], [1], [0, 0, 1, 1], [], []>} : vector<16x16xf32>, vector<16x128xf32>, vector<16x128xf32> -> vector<16x128xf32>
    %c256 = arith.constant 256 : index
    %c0_45 = arith.constant 0 : index
    %107 = vector.load %arg1[%c256, %c0_45] : memref<424x128xf32, #tpu.memory_space<vmem>>, vector<1x128xf32>
    %108 = vector.broadcast %107 : vector<1x128xf32> to vector<16x128xf32>
    %109 = arith.addf %106, %108 : vector<16x128xf32>
    %cst_46 = arith.constant 0.000000e+00 : f32
    %110 = vector.broadcast %cst_46 : f32 to vector<16x128xf32>
    %111 = arith.maximumf %109, %110 : vector<16x128xf32>
    %112 = vector.extract_strided_slice %111 {offsets = [0, 0], sizes = [16, 16], strides = [1, 1]} : vector<16x128xf32> to vector<16x16xf32>
    %c264 = arith.constant 264 : index
    %c0_47 = arith.constant 0 : index
    %113 = vector.load %arg1[%c264, %c0_47] : memref<424x128xf32, #tpu.memory_space<vmem>>, vector<16x128xf32>
    %cst_48 = arith.constant dense<0.000000e+00> : vector<16x128xf32>
    %114 = tpu.matmul %112, %113, %cst_48 {dimension_numbers = #tpu.dot_dimension_numbers<[1], [0], [0], [1], [0, 0, 1, 1], [], []>} : vector<16x16xf32>, vector<16x128xf32>, vector<16x128xf32> -> vector<16x128xf32>
    %c296 = arith.constant 296 : index
    %c0_49 = arith.constant 0 : index
    %115 = vector.load %arg1[%c296, %c0_49] : memref<424x128xf32, #tpu.memory_space<vmem>>, vector<1x128xf32>
    %116 = vector.broadcast %115 : vector<1x128xf32> to vector<16x128xf32>
    %117 = arith.addf %114, %116 : vector<16x128xf32>
    %c280 = arith.constant 280 : index
    %c0_50 = arith.constant 0 : index
    %118 = vector.load %arg1[%c280, %c0_50] : memref<424x128xf32, #tpu.memory_space<vmem>>, vector<16x128xf32>
    %cst_51 = arith.constant dense<0.000000e+00> : vector<16x128xf32>
    %119 = tpu.matmul %112, %118, %cst_51 {dimension_numbers = #tpu.dot_dimension_numbers<[1], [0], [0], [1], [0, 0, 1, 1], [], []>} : vector<16x16xf32>, vector<16x128xf32>, vector<16x128xf32> -> vector<16x128xf32>
    %cst_52 = arith.constant dense<0.000000e+00> : vector<32x128xf32>
    %120 = tpu.matmul %1, %119, %cst_52 {dimension_numbers = #tpu.dot_dimension_numbers<[1], [0], [0], [1], [0, 0, 1, 1], [], []>} : vector<32x16xf32>, vector<16x128xf32>, vector<32x128xf32> -> vector<32x128xf32>
    %cst_53 = arith.constant 0.000000e+00 : f32
    %121 = vector.broadcast %cst_53 : f32 to vector<16x128xf32>
    %cst_54 = arith.constant 0.000000e+00 : f32
    %122 = vector.broadcast %cst_54 : f32 to vector<16x128xf32>
    %cst_55 = arith.constant 1.000000e+30 : f32
    %123 = vector.broadcast %cst_55 : f32 to vector<16x128xf32>
    %cst_56 = arith.constant 0.000000e+00 : f32
    %cst_57 = arith.constant 1.000000e+30 : f32
    %124 = arith.subf %cst_56, %cst_57 : f32
    %125 = vector.broadcast %124 : f32 to vector<16x128xf32>
    %126 = vector.extract_strided_slice %120 {offsets = [0, 0], sizes = [16, 128], strides = [1, 1]} : vector<32x128xf32> to vector<16x128xf32>
    %127 = arith.addf %117, %126 : vector<16x128xf32>
    %cst_58 = arith.constant 5.000000e-01 : f32
    %128 = vector.broadcast %cst_58 : f32 to vector<16x128xf32>
    %129 = arith.cmpf ogt, %2, %128 : vector<16x128xf32>
    %cst_59 = arith.constant 0.000000e+00 : f32
    %130 = vector.broadcast %cst_59 : f32 to vector<16x128xf32>
    %131 = arith.select %129, %127, %130 : vector<16x128xi1>, vector<16x128xf32>
    %132 = arith.addf %121, %131 : vector<16x128xf32>
    %133 = arith.mulf %127, %127 : vector<16x128xf32>
    %cst_60 = arith.constant 0.000000e+00 : f32
    %134 = vector.broadcast %cst_60 : f32 to vector<16x128xf32>
    %135 = arith.select %129, %133, %134 : vector<16x128xi1>, vector<16x128xf32>
    %136 = arith.addf %122, %135 : vector<16x128xf32>
    %137 = arith.minimumf %123, %127 : vector<16x128xf32>
    %138 = arith.select %129, %137, %123 : vector<16x128xi1>, vector<16x128xf32>
    %139 = arith.maximumf %125, %127 : vector<16x128xf32>
    %140 = arith.select %129, %139, %125 : vector<16x128xi1>, vector<16x128xf32>
    %141 = vector.extract_strided_slice %120 {offsets = [16, 0], sizes = [16, 128], strides = [1, 1]} : vector<32x128xf32> to vector<16x128xf32>
    %142 = arith.addf %117, %141 : vector<16x128xf32>
    %cst_61 = arith.constant 1.500000e+00 : f32
    %143 = vector.broadcast %cst_61 : f32 to vector<16x128xf32>
    %144 = arith.cmpf ogt, %2, %143 : vector<16x128xf32>
    %cst_62 = arith.constant 0.000000e+00 : f32
    %145 = vector.broadcast %cst_62 : f32 to vector<16x128xf32>
    %146 = arith.select %144, %142, %145 : vector<16x128xi1>, vector<16x128xf32>
    %147 = arith.addf %132, %146 : vector<16x128xf32>
    %148 = arith.mulf %142, %142 : vector<16x128xf32>
    %cst_63 = arith.constant 0.000000e+00 : f32
    %149 = vector.broadcast %cst_63 : f32 to vector<16x128xf32>
    %150 = arith.select %144, %148, %149 : vector<16x128xi1>, vector<16x128xf32>
    %151 = arith.addf %136, %150 : vector<16x128xf32>
    %152 = arith.minimumf %138, %142 : vector<16x128xf32>
    %153 = arith.select %144, %152, %138 : vector<16x128xi1>, vector<16x128xf32>
    %154 = arith.maximumf %140, %142 : vector<16x128xf32>
    %155 = arith.select %144, %154, %140 : vector<16x128xi1>, vector<16x128xf32>
    %156 = arith.mulf %147, %7 : vector<16x128xf32>
    %157 = arith.mulf %151, %7 : vector<16x128xf32>
    %158 = arith.mulf %156, %156 : vector<16x128xf32>
    %159 = arith.subf %157, %158 : vector<16x128xf32>
    %cst_64 = arith.constant 0.000000e+00 : f32
    %160 = vector.broadcast %cst_64 : f32 to vector<16x128xf32>
    %161 = arith.maximumf %159, %160 : vector<16x128xf32>
    %cst_65 = arith.constant 9.99999974E-6 : f32
    %162 = vector.broadcast %cst_65 : f32 to vector<16x128xf32>
    %163 = arith.addf %161, %162 : vector<16x128xf32>
    %164 = math.sqrt %163 : vector<16x128xf32>
    %cst_66 = arith.constant 0.000000e+00 : f32
    %165 = vector.broadcast %cst_66 : f32 to vector<16x128xf32>
    %166 = arith.select %9, %153, %165 : vector<16x128xi1>, vector<16x128xf32>
    %cst_67 = arith.constant 0.000000e+00 : f32
    %167 = vector.broadcast %cst_67 : f32 to vector<16x128xf32>
    %168 = arith.select %9, %155, %167 : vector<16x128xi1>, vector<16x128xf32>
    %c304 = arith.constant 304 : index
    %c0_68 = arith.constant 0 : index
    %169 = vector.load %arg1[%c304, %c0_68] : memref<424x128xf32, #tpu.memory_space<vmem>>, vector<16x128xf32>
    %cst_69 = arith.constant dense<0.000000e+00> : vector<16x128xf32>
    %170 = tpu.matmul %112, %169, %cst_69 {dimension_numbers = #tpu.dot_dimension_numbers<[1], [0], [0], [1], [0, 0, 1, 1], [], []>} : vector<16x16xf32>, vector<16x128xf32>, vector<16x128xf32> -> vector<16x128xf32>
    %171 = vector.extract_strided_slice %156 {offsets = [0, 0], sizes = [16, 16], strides = [1, 1]} : vector<16x128xf32> to vector<16x16xf32>
    %c320 = arith.constant 320 : index
    %c0_70 = arith.constant 0 : index
    %172 = vector.load %arg1[%c320, %c0_70] : memref<424x128xf32, #tpu.memory_space<vmem>>, vector<16x128xf32>
    %cst_71 = arith.constant dense<0.000000e+00> : vector<16x128xf32>
    %173 = tpu.matmul %171, %172, %cst_71 {dimension_numbers = #tpu.dot_dimension_numbers<[1], [0], [0], [1], [0, 0, 1, 1], [], []>} : vector<16x16xf32>, vector<16x128xf32>, vector<16x128xf32> -> vector<16x128xf32>
    %174 = arith.addf %170, %173 : vector<16x128xf32>
    %175 = vector.extract_strided_slice %166 {offsets = [0, 0], sizes = [16, 16], strides = [1, 1]} : vector<16x128xf32> to vector<16x16xf32>
    %c336 = arith.constant 336 : index
    %c0_72 = arith.constant 0 : index
    %176 = vector.load %arg1[%c336, %c0_72] : memref<424x128xf32, #tpu.memory_space<vmem>>, vector<16x128xf32>
    %cst_73 = arith.constant dense<0.000000e+00> : vector<16x128xf32>
    %177 = tpu.matmul %175, %176, %cst_73 {dimension_numbers = #tpu.dot_dimension_numbers<[1], [0], [0], [1], [0, 0, 1, 1], [], []>} : vector<16x16xf32>, vector<16x128xf32>, vector<16x128xf32> -> vector<16x128xf32>
    %178 = arith.addf %174, %177 : vector<16x128xf32>
    %179 = vector.extract_strided_slice %168 {offsets = [0, 0], sizes = [16, 16], strides = [1, 1]} : vector<16x128xf32> to vector<16x16xf32>
    %c352 = arith.constant 352 : index
    %c0_74 = arith.constant 0 : index
    %180 = vector.load %arg1[%c352, %c0_74] : memref<424x128xf32, #tpu.memory_space<vmem>>, vector<16x128xf32>
    %cst_75 = arith.constant dense<0.000000e+00> : vector<16x128xf32>
    %181 = tpu.matmul %179, %180, %cst_75 {dimension_numbers = #tpu.dot_dimension_numbers<[1], [0], [0], [1], [0, 0, 1, 1], [], []>} : vector<16x16xf32>, vector<16x128xf32>, vector<16x128xf32> -> vector<16x128xf32>
    %182 = arith.addf %178, %181 : vector<16x128xf32>
    %183 = vector.extract_strided_slice %164 {offsets = [0, 0], sizes = [16, 16], strides = [1, 1]} : vector<16x128xf32> to vector<16x16xf32>
    %c368 = arith.constant 368 : index
    %c0_76 = arith.constant 0 : index
    %184 = vector.load %arg1[%c368, %c0_76] : memref<424x128xf32, #tpu.memory_space<vmem>>, vector<16x128xf32>
    %cst_77 = arith.constant dense<0.000000e+00> : vector<16x128xf32>
    %185 = tpu.matmul %183, %184, %cst_77 {dimension_numbers = #tpu.dot_dimension_numbers<[1], [0], [0], [1], [0, 0, 1, 1], [], []>} : vector<16x16xf32>, vector<16x128xf32>, vector<16x128xf32> -> vector<16x128xf32>
    %186 = arith.addf %182, %185 : vector<16x128xf32>
    %187 = vector.extract_strided_slice %186 {offsets = [0, 0], sizes = [16, 8], strides = [1, 1]} : vector<16x128xf32> to vector<16x8xf32>
    %188 = vector.extract_strided_slice %14 {offsets = [0, 0], sizes = [16, 8], strides = [1, 1]} : vector<16x128xf32> to vector<16x8xf32>
    %189 = vector.extract_strided_slice %186 {offsets = [0, 8], sizes = [16, 8], strides = [1, 1]} : vector<16x128xf32> to vector<16x8xf32>
    %190 = arith.mulf %188, %189 : vector<16x8xf32>
    %191 = arith.addf %187, %190 : vector<16x8xf32>
    %192 = vector.extract_strided_slice %16 {offsets = [0, 0], sizes = [16, 8], strides = [1, 1]} : vector<16x128xf32> to vector<16x8xf32>
    %193 = vector.extract_strided_slice %186 {offsets = [0, 16], sizes = [16, 8], strides = [1, 1]} : vector<16x128xf32> to vector<16x8xf32>
    %194 = arith.mulf %192, %193 : vector<16x8xf32>
    %195 = arith.addf %191, %194 : vector<16x8xf32>
    %c384 = arith.constant 384 : index
    %c0_78 = arith.constant 0 : index
    %196 = vector.load %arg1[%c384, %c0_78] : memref<424x128xf32, #tpu.memory_space<vmem>>, vector<1x128xf32>
    %197 = vector.extract_strided_slice %196 {offsets = [0, 0], sizes = [1, 8], strides = [1, 1]} : vector<1x128xf32> to vector<1x8xf32>
    %198 = vector.broadcast %197 : vector<1x8xf32> to vector<16x8xf32>
    %199 = arith.addf %195, %198 : vector<16x8xf32>
    %c392 = arith.constant 392 : index
    %c0_79 = arith.constant 0 : index
    %200 = vector.load %arg1[%c392, %c0_79] : memref<424x128xf32, #tpu.memory_space<vmem>>, vector<8x128xf32>
    %cst_80 = arith.constant dense<0.000000e+00> : vector<16x128xf32>
    %201 = tpu.matmul %199, %200, %cst_80 {dimension_numbers = #tpu.dot_dimension_numbers<[1], [0], [0], [1], [0, 0, 1, 1], [], []>} : vector<16x8xf32>, vector<8x128xf32>, vector<16x128xf32> -> vector<16x128xf32>
    %c400 = arith.constant 400 : index
    %c0_81 = arith.constant 0 : index
    %202 = vector.load %arg1[%c400, %c0_81] : memref<424x128xf32, #tpu.memory_space<vmem>>, vector<1x128xf32>
    %203 = vector.broadcast %202 : vector<1x128xf32> to vector<16x128xf32>
    %204 = arith.addf %201, %203 : vector<16x128xf32>
    %cst_82 = arith.constant 0.000000e+00 : f32
    %205 = vector.broadcast %cst_82 : f32 to vector<16x128xf32>
    %206 = arith.maximumf %204, %205 : vector<16x128xf32>
    %cst_83 = arith.constant dense<0.000000e+00> : vector<8x128xf32>
    %207 = tpu.matmul %3, %206, %cst_83 {dimension_numbers = #tpu.dot_dimension_numbers<[1], [0], [0], [1], [0, 0, 1, 1], [], []>} : vector<8x16xf32>, vector<16x128xf32>, vector<8x128xf32> -> vector<8x128xf32>
    %208 = vector.extract_strided_slice %207 {offsets = [0, 0], sizes = [8, 8], strides = [1, 1]} : vector<8x128xf32> to vector<8x8xf32>
    %c408 = arith.constant 408 : index
    %c0_84 = arith.constant 0 : index
    %209 = vector.load %arg1[%c408, %c0_84] : memref<424x128xf32, #tpu.memory_space<vmem>>, vector<8x128xf32>
    %cst_85 = arith.constant dense<0.000000e+00> : vector<8x128xf32>
    %210 = tpu.matmul %208, %209, %cst_85 {dimension_numbers = #tpu.dot_dimension_numbers<[1], [0], [0], [1], [0, 0, 1, 1], [], []>} : vector<8x8xf32>, vector<8x128xf32>, vector<8x128xf32> -> vector<8x128xf32>
    %c416 = arith.constant 416 : index
    %c0_86 = arith.constant 0 : index
    %211 = vector.load %arg1[%c416, %c0_86] : memref<424x128xf32, #tpu.memory_space<vmem>>, vector<1x128xf32>
    %212 = vector.broadcast %211 : vector<1x128xf32> to vector<8x128xf32>
    %213 = arith.addf %210, %212 : vector<8x128xf32>
    %214 = vector.extract_strided_slice %213 {offsets = [0, 0], sizes = [8, 1], strides = [1, 1]} : vector<8x128xf32> to vector<8x1xf32>
    %215 = vector.extract_strided_slice %213 {offsets = [0, 1], sizes = [8, 1], strides = [1, 1]} : vector<8x128xf32> to vector<8x1xf32>
    %216 = arith.maximumf %214, %215 : vector<8x1xf32>
    %217 = arith.subf %214, %216 : vector<8x1xf32>
    %218 = math.exp %217 : vector<8x1xf32>
    %219 = arith.subf %215, %216 : vector<8x1xf32>
    %220 = math.exp %219 : vector<8x1xf32>
    %221 = arith.addf %218, %220 : vector<8x1xf32>
    %222 = math.log %221 : vector<8x1xf32>
    %223 = arith.addf %216, %222 : vector<8x1xf32>
    %224 = vector.broadcast %223 : vector<8x1xf32> to vector<8x128xf32>
    %225 = arith.subf %213, %224 : vector<8x128xf32>
    %c0_87 = arith.constant 0 : index
    %c0_88 = arith.constant 0 : index
    %226 = vector.load %arg2[%c0_87, %c0_88] : memref<8x128xf32, #tpu.memory_space<vmem>>, vector<8x128xf32>
    tpu.vector_store %arg2[%c0_87, %c0_88], %225 {strides = array<i32>} : memref<8x128xf32, #tpu.memory_space<vmem>>, vector<8x128xf32>,
    return
  }
}

</mosaic_0001>

<llo_original>
// kernel: tpu_custom_call.1
$region0: #{tpu_custom_call.1}
  #allocation0 [shape = 'u32[]', space=smem, size = 0x4, offset = 0x4, fixed_abs, tag = 'smem constant byte address 0x4 - core index']
  #allocation1 [shape = 'u32[144,128]{1,0:T(1,128)}', space=vmem, size = 0x12000, scoped, tag = 'internal scratch']
  %s0 = inlined_call_operand.hbm [shape: f32[72,128], index: 0, kind: input, shape index: {}]
  %s1 = inlined_call_operand.hbm [shape: f32[424,128], index: 1, kind: input, shape index: {}]
  %s2 = inlined_call_operand.hbm [shape: f32[8,128], index: 2, kind: output, shape index: {}]
  %s3 = sld [smem:[#allocation0]]
  $region26: #{tpu_custom_call.1} parent=0
    _
  %s5 = ssub.s32 1, %s3
  %s6 = scalar_select 0, %s5, %s3
  $region1: #{tpu_custom_call.1} parent=0
    #allocation2 [shape = 'u8[36864]{0}', space=vmem, size = 0x9000, scoped, tag = 'input window, operand 0, single buffered']
    #allocation3 [shape = 's32[1]{0}', space=sflag, size = 0x4, scoped, tag = 'scoped memory for tpu_custom_call.1']
    #allocation4 [shape = 's32[1]{0}', space=sflag, size = 0x4, scoped, tag = 'scoped memory for tpu_custom_call.1']
    #allocation5 [shape = 'u8[217088]{0}', space=vmem, size = 0x35000, scoped, tag = 'input window, operand 1, single buffered']
    #allocation6 [shape = 's32[1]{0}', space=sflag, size = 0x4, scoped, tag = 'scoped memory for tpu_custom_call.1']
    #allocation7 [shape = 'u8[4096]{0}', space=vmem, size = 0x1000, scoped, tag = 'output window, operand 0, single buffered']
    %7 = vsyncpa [#allocation3], 0
    %8 = vsyncpa [#allocation6], 0
    %9 = vsyncpa [#allocation4], 0
    // Predicated region
    $region2: #{tpu_custom_call.1} parent=1 // pred_check
      _
    $region3: #{tpu_custom_call.1} parent=1 // pred_check_branch
      %11 = sbr.rel (0) target = $region5
    $region4: #{tpu_custom_call.1} parent=1 // pred_region
      %s13 = ssub.s32 1152, 1152
      %14 = vsyncadd [#allocation3], %s13
      %s15 = sshll.u32 [#allocation2], 4
      %s16 = int_to_ptr.vmem [resolvable:$true] %s15
      %21 = dma.hbm_to_vmem [thread:$0]  %s0, 1152, %s16, [#allocation3], 128, 128, 8
    $region5: #{tpu_custom_call.1} parent=1 // pred_fallthru
      _
    // Predicated region
    $region6: #{tpu_custom_call.1} parent=1 // pred_check
      _
    $region7: #{tpu_custom_call.1} parent=1 // pred_check_branch
      %23 = sbr.rel (0) target = $region9
    $region8: #{tpu_custom_call.1} parent=1 // pred_region
      %s25 = ssub.s32 6784, 6784
      %26 = vsyncadd [#allocation6], %s25
      %s27 = sshll.u32 [#allocation5], 4
      %s28 = int_to_ptr.vmem [resolvable:$true] %s27
      %33 = dma.hbm_to_vmem [thread:$0]  %s1, 6784, %s28, [#allocation6], 128, 128, 8
    $region9: #{tpu_custom_call.1} parent=1 // pred_fallthru
      _
    // Predicated region
    $region10: #{tpu_custom_call.1} parent=1 // pred_check
      _
    $region11: #{tpu_custom_call.1} parent=1 // pred_check_branch
      %35 = sbr.rel (0) target = $region13
    $region12: #{tpu_custom_call.1} parent=1 // pred_region
      %36 = dma.done [#allocation3], 1152
    $region13: #{tpu_custom_call.1} parent=1 // pred_fallthru
      _
    // Predicated region
    $region14: #{tpu_custom_call.1} parent=1 // pred_check
      _
    $region15: #{tpu_custom_call.1} parent=1 // pred_check_branch
      %38 = sbr.rel (0) target = $region17
    $region16: #{tpu_custom_call.1} parent=1 // pred_region
      %39 = dma.done [#allocation6], 6784
    $region17: #{tpu_custom_call.1} parent=1 // pred_fallthru
      _
    %v40 = vld [vmem:[#allocation2] sm:$0xff]
    %v41 = vld [vmem:[#allocation2 + $0x8] sm:$0xff]
    %v42 = vld [vmem:[#allocation2 + $0x10] sm:$0xff]
    %v43 = vld [vmem:[#allocation2 + $0x18] sm:$0xff]
    %v44 = vld [vmem:[#allocation2 + $0x20] sm:$0xff]
    %v45 = vld [vmem:[#allocation2 + $0x28] sm:$0xff]
    %v46 = vld [vmem:[#allocation2 + $0x30] sm:$0xff]
    %v47 = vld [vmem:[#allocation2 + $0x38] sm:$0xff]
    %v48 = vld [vmem:[#allocation2 + $0x40] sm:$0xff]
    %v49 = vmax.f32 %v46, 1.0
    %v50 = vmax.f32 %v47, 1.0
    %v51 = vrcp.pop %v49
    %v52 = vmul.f32 1.0, %v51
    %v53 = vrcp.pop %v50
    %v54 = vmul.f32 1.0, %v53
    %vm55 = vcmp.gt.f32.partialorder %v46, 0.5
    %vm56 = vcmp.gt.f32.partialorder %v47, 0.5
    %v57 = vadd.f32 %v49, 1.0
    %v58 = vadd.f32 %v50, 1.0
    %v59 = vlog2.pop %v57
    %v60 = vmul.f32 %v59, 0.6931472
    %v61 = vlog2.pop %v58
    %v62 = vmul.f32 %v61, 0.6931472
    %v63 = vmul.f32 %v60, 0.9102392
    %v64 = vmul.f32 %v62, 0.9102392
    %v65 = vrcp.pop %v60
    %v66 = vmul.f32 1.0986123, %v65
    %v67 = vrcp.pop %v62
    %v68 = vmul.f32 1.0986123, %v67
    %v69 = vld [vmem:[#allocation5] sm:$0xff]
    %v70 = vld [vmem:[#allocation5 + $0x8] sm:$0xff]
    %v71 = vld [vmem:[#allocation5 + $0x10] sm:$0xff]
    %v72 = vld [vmem:[#allocation5 + $0x18] sm:$0xff]
    %v73 = vld [vmem:[#allocation5 + $0x40] sm:$0x1]
    %v74 = vlaneseq
    %v75 = vshrl.u32 %v74, 7
    %v76 = vsub.s32 0, %v75
    %v77 = vrot.slane %v73, %v76
    %vm78 = vcmask 261120
    %v80 = vsel %vm78, %v40, 0
    %v83 = vsel %vm78, %v41, 0
    %85 = vmatprep.subr.mxu0 0.0
    %86 = vmatpush1.msra.mxu0 0.0
    %87 = vmatprep.subr.mxu0 0.0
    %88 = vmatpush1.msra.mxu0 0.0
    %89 = vmatprep.subr.mxu0 0.0
    %90 = vmatpush1.msra.mxu0 0.0
    %91 = vmatprep.subr.mxu0 0.0
    %92 = vmatpush1.msra.mxu0 0.0
    %93 = vmatprep.subr.mxu0 0.0
    %94 = vmatpush1.msra.mxu0 0.0
    %95 = vmatprep.subr.mxu0 0.0
    %96 = vmatpush1.msra.mxu0 0.0
    %97 = vmatprep.subr.mxu0 0.0
    %98 = vmatpush1.msra.mxu0 0.0
    %99 = vmatprep.subr.mxu0 0.0
    %100 = vmatpush1.msra.mxu0 0.0
    %101 = vmatprep.subr.mxu0 0.0
    %102 = vmatpush1.msra.mxu0 0.0
    %103 = vmatprep.subr.mxu0 0.0
    %104 = vmatpush1.msra.mxu0 0.0
    %105 = vmatprep.subr.mxu0 0.0
    %106 = vmatpush1.msra.mxu0 0.0
    %107 = vmatprep.subr.mxu0 0.0
    %108 = vmatpush1.msra.mxu0 0.0
    %109 = vmatprep.subr.mxu0 0.0
    %110 = vmatpush1.msra.mxu0 %v72
    %111 = vmatprep.subr.mxu0 0.0
    %112 = vmatpush1.msra.mxu0 %v71
    %113 = vmatprep.subr.mxu0 0.0
    %114 = vmatpush1.msra.mxu0 %v70
    %115 = vmatprep.subr.mxu0 0.0
    %116 = vmatpush1.msra.mxu0 %v69
    %117 = vmatprep.subr.mxu0 0.0
    %118 = vmatpush2.msra.mxu0 0.0
    %119 = vmatprep.subr.mxu0 0.0
    %120 = vmatpush2.msra.mxu0 0.0
    %121 = vmatprep.subr.mxu0 0.0
    %122 = vmatpush2.msra.mxu0 0.0
    %123 = vmatprep.subr.mxu0 0.0
    %124 = vmatpush2.msra.mxu0 0.0
    %125 = vmatprep.subr.mxu0 0.0
    %126 = vmatpush2.msra.mxu0 0.0
    %127 = vmatprep.subr.mxu0 0.0
    %128 = vmatpush2.msra.mxu0 0.0
    %129 = vmatprep.subr.mxu0 0.0
    %130 = vmatpush2.msra.mxu0 0.0
    %131 = vmatprep.subr.mxu0 0.0
    %132 = vmatpush2.msra.mxu0 0.0
    %133 = vmatprep.subr.mxu0 0.0
    %134 = vmatpush2.msra.mxu0 0.0
    %135 = vmatprep.subr.mxu0 0.0
    %136 = vmatpush2.msra.mxu0 0.0
    %137 = vmatprep.subr.mxu0 0.0
    %138 = vmatpush2.msra.mxu0 0.0
    %139 = vmatprep.subr.mxu0 0.0
    %140 = vmatpush2.msra.mxu0 0.0
    %141 = vmatprep.subr.mxu0 0.0
    %142 = vmatpush2.msra.mxu0 0.0
    %143 = vmatprep.subr.mxu0 0.0
    %144 = vmatpush2.msra.mxu0 0.0
    %145 = vmatprep.subr.mxu0 0.0
    %146 = vmatpush2.msra.mxu0 0.0
    %147 = vmatprep.subr.mxu0 0.0
    %148 = vmatpush2.msra.mxu0 0.0
    %149 = vmatprep.mubr.f32.mxu0 0.0
    %150 = vmatmul.mubr.f32.gmra.mxu0 %v80
    %v151 = vpop.f32.mrf.mxu0
    %v152 = vadd.f32 %v77, %v151
    %v153 = vpop.f32.mrf.mxu0
    %154 = vmatprep.mubr.f32.mxu0 0.0
    %155 = vmatmul.mubr.f32.gmra.mxu0 %v83
    %v156 = vpop.f32.mrf.mxu0
    %v157 = vadd.f32 %v77, %v156
    %v158 = vpop.f32.mrf.mxu0
    %159 = vdwg.mxu0
    %v160 = vld [vmem:[#allocation5 + $0x20] sm:$0xff]
    %v161 = vld [vmem:[#allocation5 + $0x28] sm:$0xff]
    %v162 = vld [vmem:[#allocation5 + $0x30] sm:$0xff]
    %v163 = vld [vmem:[#allocation5 + $0x38] sm:$0xff]
    %164 = vmatprep.subr.mxu0 0.0
    %165 = vmatpush1.msra.mxu0 0.0
    %166 = vmatprep.subr.mxu0 0.0
    %167 = vmatpush1.msra.mxu0 0.0
    %168 = vmatprep.subr.mxu0 0.0
    %169 = vmatpush1.msra.mxu0 0.0
    %170 = vmatprep.subr.mxu0 0.0
    %171 = vmatpush1.msra.mxu0 0.0
    %172 = vmatprep.subr.mxu0 0.0
    %173 = vmatpush1.msra.mxu0 0.0
    %174 = vmatprep.subr.mxu0 0.0
    %175 = vmatpush1.msra.mxu0 0.0
    %176 = vmatprep.subr.mxu0 0.0
    %177 = vmatpush1.msra.mxu0 0.0
    %178 = vmatprep.subr.mxu0 0.0
    %179 = vmatpush1.msra.mxu0 0.0
    %180 = vmatprep.subr.mxu0 0.0
    %181 = vmatpush1.msra.mxu0 0.0
    %182 = vmatprep.subr.mxu0 0.0
    %183 = vmatpush1.msra.mxu0 0.0
    %184 = vmatprep.subr.mxu0 0.0
    %185 = vmatpush1.msra.mxu0 0.0
    %186 = vmatprep.subr.mxu0 0.0
    %187 = vmatpush1.msra.mxu0 0.0
    %188 = vmatprep.subr.mxu0 0.0
    %189 = vmatpush1.msra.mxu0 %v163
    %190 = vmatprep.subr.mxu0 0.0
    %191 = vmatpush1.msra.mxu0 %v162
    %192 = vmatprep.subr.mxu0 0.0
    %193 = vmatpush1.msra.mxu0 %v161
    %194 = vmatprep.subr.mxu0 0.0
    %195 = vmatpush1.msra.mxu0 %v160
    %196 = vmatprep.subr.mxu0 0.0
    %197 = vmatpush2.msra.mxu0 0.0
    %198 = vmatprep.subr.mxu0 0.0
    %199 = vmatpush2.msra.mxu0 0.0
    %200 = vmatprep.subr.mxu0 0.0
    %201 = vmatpush2.msra.mxu0 0.0
    %202 = vmatprep.subr.mxu0 0.0
    %203 = vmatpush2.msra.mxu0 0.0
    %204 = vmatprep.subr.mxu0 0.0
    %205 = vmatpush2.msra.mxu0 0.0
    %206 = vmatprep.subr.mxu0 0.0
    %207 = vmatpush2.msra.mxu0 0.0
    %208 = vmatprep.subr.mxu0 0.0
    %209 = vmatpush2.msra.mxu0 0.0
    %210 = vmatprep.subr.mxu0 0.0
    %211 = vmatpush2.msra.mxu0 0.0
    %212 = vmatprep.subr.mxu0 0.0
    %213 = vmatpush2.msra.mxu0 0.0
    %214 = vmatprep.subr.mxu0 0.0
    %215 = vmatpush2.msra.mxu0 0.0
    %216 = vmatprep.subr.mxu0 0.0
    %217 = vmatpush2.msra.mxu0 0.0
    %218 = vmatprep.subr.mxu0 0.0
    %219 = vmatpush2.msra.mxu0 0.0
    %220 = vmatprep.subr.mxu0 0.0
    %221 = vmatpush2.msra.mxu0 0.0
    %222 = vmatprep.subr.mxu0 0.0
    %223 = vmatpush2.msra.mxu0 0.0
    %224 = vmatprep.subr.mxu0 0.0
    %225 = vmatpush2.msra.mxu0 0.0
    %226 = vmatprep.subr.mxu0 0.0
    %227 = vmatpush2.msra.mxu0 0.0
    %228 = vmatprep.mubr.f32.mxu0 0.0
    %229 = vmatmul.mubr.f32.gmra.mxu0 %v80
    %v230 = vpop.f32.mrf.mxu0
    %v231 = vadd.f32 0.0, %v230
    %v232 = vpop.f32.mrf.mxu0
    %233 = vmatprep.mubr.f32.mxu0 0.0
    %234 = vmatmul.mubr.f32.gmra.mxu0 %v83
    %v235 = vpop.f32.mrf.mxu0
    %v236 = vadd.f32 0.0, %v235
    %v237 = vpop.f32.mrf.mxu0
    %238 = vdwg.mxu0
    %vm239 = vcmask 130048
    %v241 = vsel %vm239, %v42, 0
    %v244 = vsel %vm239, %v43, 0
    %v247 = vsel %vm239, %v44, 0
    %v250 = vsel %vm239, %v45, 0
    %252 = vmatprep.subr.mxu0 0.0
    %253 = vmatpush1.msra.mxu0 0.0
    %254 = vmatprep.subr.mxu0 0.0
    %255 = vmatpush1.msra.mxu0 0.0
    %256 = vmatprep.subr.mxu0 0.0
    %257 = vmatpush1.msra.mxu0 0.0
    %258 = vmatprep.subr.mxu0 0.0
    %259 = vmatpush1.msra.mxu0 0.0
    %260 = vmatprep.subr.mxu0 0.0
    %261 = vmatpush1.msra.mxu0 0.0
    %262 = vmatprep.subr.mxu0 0.0
    %263 = vmatpush1.msra.mxu0 0.0
    %264 = vmatprep.subr.mxu0 0.0
    %265 = vmatpush1.msra.mxu0 0.0
    %266 = vmatprep.subr.mxu0 0.0
    %267 = vmatpush1.msra.mxu0 0.0
    %268 = vmatprep.subr.mxu0 0.0
    %269 = vmatpush1.msra.mxu0 0.0
    %270 = vmatprep.subr.mxu0 0.0
    %271 = vmatpush1.msra.mxu0 0.0
    %272 = vmatprep.subr.mxu0 0.0
    %273 = vmatpush1.msra.mxu0 0.0
    %274 = vmatprep.subr.mxu0 0.0
    %275 = vmatpush1.msra.mxu0 0.0
    %276 = vmatprep.subr.mxu0 0.0
    %277 = vmatpush1.msra.mxu0 0.0
    %278 = vmatprep.subr.mxu0 0.0
    %279 = vmatpush1.msra.mxu0 0.0
    %280 = vmatprep.subr.mxu0 0.0
    %281 = vmatpush1.msra.mxu0 %v236
    %282 = vmatprep.subr.mxu0 0.0
    %283 = vmatpush1.msra.mxu0 %v231
    %284 = vmatprep.subr.mxu0 0.0
    %285 = vmatpush2.msra.mxu0 0.0
    %286 = vmatprep.subr.mxu0 0.0
    %287 = vmatpush2.msra.mxu0 0.0
    %288 = vmatprep.subr.mxu0 0.0
    %289 = vmatpush2.msra.mxu0 0.0
    %290 = vmatprep.subr.mxu0 0.0
    %291 = vmatpush2.msra.mxu0 0.0
    %292 = vmatprep.subr.mxu0 0.0
    %293 = vmatpush2.msra.mxu0 0.0
    %294 = vmatprep.subr.mxu0 0.0
    %295 = vmatpush2.msra.mxu0 0.0
    %296 = vmatprep.subr.mxu0 0.0
    %297 = vmatpush2.msra.mxu0 0.0
    %298 = vmatprep.subr.mxu0 0.0
    %299 = vmatpush2.msra.mxu0 0.0
    %300 = vmatprep.subr.mxu0 0.0
    %301 = vmatpush2.msra.mxu0 0.0
    %302 = vmatprep.subr.mxu0 0.0
    %303 = vmatpush2.msra.mxu0 0.0
    %304 = vmatprep.subr.mxu0 0.0
    %305 = vmatpush2.msra.mxu0 0.0
    %306 = vmatprep.subr.mxu0 0.0
    %307 = vmatpush2.msra.mxu0 0.0
    %308 = vmatprep.subr.mxu0 0.0
    %309 = vmatpush2.msra.mxu0 0.0
    %310 = vmatprep.subr.mxu0 0.0
    %311 = vmatpush2.msra.mxu0 0.0
    %312 = vmatprep.subr.mxu0 0.0
    %313 = vmatpush2.msra.mxu0 0.0
    %314 = vmatprep.subr.mxu0 0.0
    %315 = vmatpush2.msra.mxu0 0.0
    %316 = vmatprep.mubr.f32.mxu0 0.0
    %317 = vmatmul.mubr.f32.gmra.mxu0 %v241
    %v318 = vpop.f32.mrf.mxu0
    %v319 = vadd.f32 0.0, %v318
    %v320 = vpop.f32.mrf.mxu0
    %321 = vmatprep.mubr.f32.mxu0 0.0
    %322 = vmatmul.mubr.f32.gmra.mxu0 %v244
    %v323 = vpop.f32.mrf.mxu0
    %v324 = vadd.f32 0.0, %v323
    %v325 = vpop.f32.mrf.mxu0
    %326 = vmatprep.mubr.f32.mxu0 0.0
    %327 = vmatmul.mubr.f32.gmra.mxu0 %v247
    %v328 = vpop.f32.mrf.mxu0
    %v329 = vadd.f32 0.0, %v328
    %v330 = vpop.f32.mrf.mxu0
    %331 = vmatprep.mubr.f32.mxu0 0.0
    %332 = vmatmul.mubr.f32.gmra.mxu0 %v250
    %v333 = vpop.f32.mrf.mxu0
    %v334 = vadd.f32 0.0, %v333
    %v335 = vpop.f32.mrf.mxu0
    %336 = vdwg.mxu0
    %v337 = vadd.f32 %v152, %v319
    %v338 = vadd.f32 %v157, %v324
    %v339 = vsel %vm55, %v337, 0.0
    %v340 = vsel %vm56, %v338, 0.0
    %v341 = vadd.f32 %v339, 0.0
    %v342 = vadd.f32 %v340, 0.0
    %v343 = vmul.f32 %v337, %v337
    %v344 = vmul.f32 %v338, %v338
    %v345 = vsel %vm55, %v343, 0.0
    %v346 = vsel %vm56, %v344, 0.0
    %v347 = vadd.f32 %v345, 0.0
    %v348 = vadd.f32 %v346, 0.0
    %v349 = vmin.f32 %v337, 1e+30
    %v350 = vmin.f32 %v338, 1e+30
    %v351 = vsel %vm55, %v349, 1e+30
    %v352 = vsel %vm56, %v350, 1e+30
    %v353 = vmax.f32 %v337, -1e+30
    %v354 = vmax.f32 %v338, -1e+30
    %v355 = vsel %vm55, %v353, -1e+30
    %v356 = vsel %vm56, %v354, -1e+30
    %v357 = vadd.f32 %v152, %v329
    %v358 = vadd.f32 %v157, %v334
    %vm359 = vcmp.gt.f32.partialorder %v46, 1.5
    %vm360 = vcmp.gt.f32.partialorder %v47, 1.5
    %v361 = vsel %vm359, %v357, 0.0
    %v362 = vsel %vm360, %v358, 0.0
    %v363 = vadd.f32 %v341, %v361
    %v364 = vadd.f32 %v342, %v362
    %v365 = vmul.f32 %v357, %v357
    %v366 = vmul.f32 %v358, %v358
    %v367 = vsel %vm359, %v365, 0.0
    %v368 = vsel %vm360, %v366, 0.0
    %v369 = vadd.f32 %v347, %v367
    %v370 = vadd.f32 %v348, %v368
    %v371 = vmin.f32 %v351, %v357
    %v372 = vmin.f32 %v352, %v358
    %v373 = vsel %vm359, %v371, %v351
    %v374 = vsel %vm360, %v372, %v352
    %v375 = vmax.f32 %v355, %v357
    %v376 = vmax.f32 %v356, %v358
    %v377 = vsel %vm359, %v375, %v355
    %v378 = vsel %vm360, %v376, %v356
    %v379 = vmul.f32 %v363, %v52
    %v380 = vmul.f32 %v364, %v54
    %v381 = vmul.f32 %v369, %v52
    %v382 = vmul.f32 %v370, %v54
    %v383 = vmul.f32 %v379, %v379
    %v384 = vmul.f32 %v380, %v380
    %v385 = vsub.f32 %v381, %v383
    %v386 = vsub.f32 %v382, %v384
    %v387 = vmax.f32 %v385, 0.0
    %v388 = vmax.f32 %v386, 0.0
    %v389 = vadd.f32 %v387, 1e-05
    %v390 = vadd.f32 %v388, 1e-05
    %v391 = vrsqrt.pop %v389
    %v392 = vmul.f32 %v389, %v391
    %vm393 = vcmp.eq.f32.partialorder %v389, inf
    %v394 = vsel %vm393, %v389, %v392
    %vm395 = vcmp.eq.f32.partialorder %v389, 0.0
    %v396 = vand.u32 %v389, 2147483648
    %v397 = vsel %vm395, %v396, %v394
    %v398 = vrsqrt.pop %v390
    %v399 = vmul.f32 %v390, %v398
    %vm400 = vcmp.eq.f32.partialorder %v390, inf
    %v401 = vsel %vm400, %v390, %v399
    %vm402 = vcmp.eq.f32.partialorder %v390, 0.0
    %v403 = vand.u32 %v390, 2147483648
    %v404 = vsel %vm402, %v403, %v401
    %v405 = vsel %vm55, %v373, 0.0
    %v406 = vsel %vm56, %v374, 0.0
    %v407 = vsel %vm55, %v377, 0.0
    %v408 = vsel %vm56, %v378, 0.0
    %v409 = vld [vmem:[#allocation5 + $0x48] sm:$0xff]
    %v410 = vld [vmem:[#allocation5 + $0x50] sm:$0xff]
    %v411 = vld [vmem:[#allocation5 + $0x58] sm:$0xff]
    %v412 = vld [vmem:[#allocation5 + $0x60] sm:$0xff]
    %v413 = vld [vmem:[#allocation5 + $0x68] sm:$0xff]
    %v414 = vld [vmem:[#allocation5 + $0x70] sm:$0xff]
    %v415 = vld [vmem:[#allocation5 + $0x78] sm:$0xff]
    %v416 = vld [vmem:[#allocation5 + $0x80] sm:$0xff]
    %v418 = vsel %vm78, %v379, 0
    %v421 = vsel %vm78, %v380, 0
    %423 = vmatprep.subr.mxu0 0.0
    %424 = vmatpush1.msra.mxu0 0.0
    %425 = vmatprep.subr.mxu0 0.0
    %426 = vmatpush1.msra.mxu0 0.0
    %427 = vmatprep.subr.mxu0 0.0
    %428 = vmatpush1.msra.mxu0 0.0
    %429 = vmatprep.subr.mxu0 0.0
    %430 = vmatpush1.msra.mxu0 0.0
    %431 = vmatprep.subr.mxu0 0.0
    %432 = vmatpush1.msra.mxu0 0.0
    %433 = vmatprep.subr.mxu0 0.0
    %434 = vmatpush1.msra.mxu0 0.0
    %435 = vmatprep.subr.mxu0 0.0
    %436 = vmatpush1.msra.mxu0 0.0
    %437 = vmatprep.subr.mxu0 0.0
    %438 = vmatpush1.msra.mxu0 0.0
    %439 = vmatprep.subr.mxu0 0.0
    %440 = vmatpush1.msra.mxu0 0.0
    %441 = vmatprep.subr.mxu0 0.0
    %442 = vmatpush1.msra.mxu0 0.0
    %443 = vmatprep.subr.mxu0 0.0
    %444 = vmatpush1.msra.mxu0 0.0
    %445 = vmatprep.subr.mxu0 0.0
    %446 = vmatpush1.msra.mxu0 0.0
    %447 = vmatprep.subr.mxu0 0.0
    %448 = vmatpush1.msra.mxu0 %v416
    %449 = vmatprep.subr.mxu0 0.0
    %450 = vmatpush1.msra.mxu0 %v415
    %451 = vmatprep.subr.mxu0 0.0
    %452 = vmatpush1.msra.mxu0 %v414
    %453 = vmatprep.subr.mxu0 0.0
    %454 = vmatpush1.msra.mxu0 %v413
    %455 = vmatprep.subr.mxu0 0.0
    %456 = vmatpush2.msra.mxu0 0.0
    %457 = vmatprep.subr.mxu0 0.0
    %458 = vmatpush2.msra.mxu0 0.0
    %459 = vmatprep.subr.mxu0 0.0
    %460 = vmatpush2.msra.mxu0 0.0
    %461 = vmatprep.subr.mxu0 0.0
    %462 = vmatpush2.msra.mxu0 0.0
    %463 = vmatprep.subr.mxu0 0.0
    %464 = vmatpush2.msra.mxu0 0.0
    %465 = vmatprep.subr.mxu0 0.0
    %466 = vmatpush2.msra.mxu0 0.0
    %467 = vmatprep.subr.mxu0 0.0
    %468 = vmatpush2.msra.mxu0 0.0
    %469 = vmatprep.subr.mxu0 0.0
    %470 = vmatpush2.msra.mxu0 0.0
    %471 = vmatprep.subr.mxu0 0.0
    %472 = vmatpush2.msra.mxu0 0.0
    %473 = vmatprep.subr.mxu0 0.0
    %474 = vmatpush2.msra.mxu0 0.0
    %475 = vmatprep.subr.mxu0 0.0
    %476 = vmatpush2.msra.mxu0 0.0
    %477 = vmatprep.subr.mxu0 0.0
    %478 = vmatpush2.msra.mxu0 0.0
    %479 = vmatprep.subr.mxu0 0.0
    %480 = vmatpush2.msra.mxu0 0.0
    %481 = vmatprep.subr.mxu0 0.0
    %482 = vmatpush2.msra.mxu0 0.0
    %483 = vmatprep.subr.mxu0 0.0
    %484 = vmatpush2.msra.mxu0 0.0
    %485 = vmatprep.subr.mxu0 0.0
    %486 = vmatpush2.msra.mxu0 0.0
    %487 = vmatprep.mubr.f32.mxu0 0.0
    %488 = vmatmul.mubr.f32.gmra.mxu0 %v418
    %v489 = vpop.f32.mrf.mxu0
    %v490 = vadd.f32 0.0, %v489
    %v491 = vpop.f32.mrf.mxu0
    %492 = vmatprep.mubr.f32.mxu0 0.0
    %493 = vmatmul.mubr.f32.gmra.mxu0 %v421
    %v494 = vpop.f32.mrf.mxu0
    %v495 = vadd.f32 0.0, %v494
    %v496 = vpop.f32.mrf.mxu0
    %497 = vdwg.mxu0
    %498 = vmatprep.subr.mxu0 0.0
    %499 = vmatpush1.msra.mxu0 0.0
    %500 = vmatprep.subr.mxu0 0.0
    %501 = vmatpush1.msra.mxu0 0.0
    %502 = vmatprep.subr.mxu0 0.0
    %503 = vmatpush1.msra.mxu0 0.0
    %504 = vmatprep.subr.mxu0 0.0
    %505 = vmatpush1.msra.mxu0 0.0
    %506 = vmatprep.subr.mxu0 0.0
    %507 = vmatpush1.msra.mxu0 0.0
    %508 = vmatprep.subr.mxu0 0.0
    %509 = vmatpush1.msra.mxu0 0.0
    %510 = vmatprep.subr.mxu0 0.0
    %511 = vmatpush1.msra.mxu0 0.0
    %512 = vmatprep.subr.mxu0 0.0
    %513 = vmatpush1.msra.mxu0 0.0
    %514 = vmatprep.subr.mxu0 0.0
    %515 = vmatpush1.msra.mxu0 0.0
    %516 = vmatprep.subr.mxu0 0.0
    %517 = vmatpush1.msra.mxu0 0.0
    %518 = vmatprep.subr.mxu0 0.0
    %519 = vmatpush1.msra.mxu0 0.0
    %520 = vmatprep.subr.mxu0 0.0
    %521 = vmatpush1.msra.mxu0 0.0
    %522 = vmatprep.subr.mxu0 0.0
    %523 = vmatpush1.msra.mxu0 %v412
    %524 = vmatprep.subr.mxu0 0.0
    %525 = vmatpush1.msra.mxu0 %v411
    %526 = vmatprep.subr.mxu0 0.0
    %527 = vmatpush1.msra.mxu0 %v410
    %528 = vmatprep.subr.mxu0 0.0
    %529 = vmatpush1.msra.mxu0 %v409
    %530 = vmatprep.subr.mxu0 0.0
    %531 = vmatpush2.msra.mxu0 0.0
    %532 = vmatprep.subr.mxu0 0.0
    %533 = vmatpush2.msra.mxu0 0.0
    %534 = vmatprep.subr.mxu0 0.0
    %535 = vmatpush2.msra.mxu0 0.0
    %536 = vmatprep.subr.mxu0 0.0
    %537 = vmatpush2.msra.mxu0 0.0
    %538 = vmatprep.subr.mxu0 0.0
    %539 = vmatpush2.msra.mxu0 0.0
    %540 = vmatprep.subr.mxu0 0.0
    %541 = vmatpush2.msra.mxu0 0.0
    %542 = vmatprep.subr.mxu0 0.0
    %543 = vmatpush2.msra.mxu0 0.0
    %544 = vmatprep.subr.mxu0 0.0
    %545 = vmatpush2.msra.mxu0 0.0
    %546 = vmatprep.subr.mxu0 0.0
    %547 = vmatpush2.msra.mxu0 0.0
    %548 = vmatprep.subr.mxu0 0.0
    %549 = vmatpush2.msra.mxu0 0.0
    %550 = vmatprep.subr.mxu0 0.0
    %551 = vmatpush2.msra.mxu0 0.0
    %552 = vmatprep.subr.mxu0 0.0
    %553 = vmatpush2.msra.mxu0 0.0
    %554 = vmatprep.subr.mxu0 0.0
    %555 = vmatpush2.msra.mxu0 0.0
    %556 = vmatprep.subr.mxu0 0.0
    %557 = vmatpush2.msra.mxu0 0.0
    %558 = vmatprep.subr.mxu0 0.0
    %559 = vmatpush2.msra.mxu0 0.0
    %560 = vmatprep.subr.mxu0 0.0
    %561 = vmatpush2.msra.mxu0 0.0
    %562 = vmatprep.mubr.f32.mxu0 0.0
    %563 = vmatmul.mubr.f32.gmra.mxu0 %v80
    %v564 = vpop.f32.mrf.mxu0
    %v565 = vadd.f32 %v490, %v564
    %v566 = vpop.f32.mrf.mxu0
    %567 = vmatprep.mubr.f32.mxu0 0.0
    %568 = vmatmul.mubr.f32.gmra.mxu0 %v83
    %v569 = vpop.f32.mrf.mxu0
    %v570 = vadd.f32 %v495, %v569
    %v571 = vpop.f32.mrf.mxu0
    %572 = vdwg.mxu0
    %v573 = vld [vmem:[#allocation5 + $0x88] sm:$0xff]
    %v574 = vld [vmem:[#allocation5 + $0x90] sm:$0xff]
    %v575 = vld [vmem:[#allocation5 + $0x98] sm:$0xff]
    %v576 = vld [vmem:[#allocation5 + $0xa0] sm:$0xff]
    %v578 = vsel %vm78, %v405, 0
    %v581 = vsel %vm78, %v406, 0
    %583 = vmatprep.subr.mxu0 0.0
    %584 = vmatpush1.msra.mxu0 0.0
    %585 = vmatprep.subr.mxu0 0.0
    %586 = vmatpush1.msra.mxu0 0.0
    %587 = vmatprep.subr.mxu0 0.0
    %588 = vmatpush1.msra.mxu0 0.0
    %589 = vmatprep.subr.mxu0 0.0
    %590 = vmatpush1.msra.mxu0 0.0
    %591 = vmatprep.subr.mxu0 0.0
    %592 = vmatpush1.msra.mxu0 0.0
    %593 = vmatprep.subr.mxu0 0.0
    %594 = vmatpush1.msra.mxu0 0.0
    %595 = vmatprep.subr.mxu0 0.0
    %596 = vmatpush1.msra.mxu0 0.0
    %597 = vmatprep.subr.mxu0 0.0
    %598 = vmatpush1.msra.mxu0 0.0
    %599 = vmatprep.subr.mxu0 0.0
    %600 = vmatpush1.msra.mxu0 0.0
    %601 = vmatprep.subr.mxu0 0.0
    %602 = vmatpush1.msra.mxu0 0.0
    %603 = vmatprep.subr.mxu0 0.0
    %604 = vmatpush1.msra.mxu0 0.0
    %605 = vmatprep.subr.mxu0 0.0
    %606 = vmatpush1.msra.mxu0 0.0
    %607 = vmatprep.subr.mxu0 0.0
    %608 = vmatpush1.msra.mxu0 %v576
    %609 = vmatprep.subr.mxu0 0.0
    %610 = vmatpush1.msra.mxu0 %v575
    %611 = vmatprep.subr.mxu0 0.0
    %612 = vmatpush1.msra.mxu0 %v574
    %613 = vmatprep.subr.mxu0 0.0
    %614 = vmatpush1.msra.mxu0 %v573
    %615 = vmatprep.subr.mxu0 0.0
    %616 = vmatpush2.msra.mxu0 0.0
    %617 = vmatprep.subr.mxu0 0.0
    %618 = vmatpush2.msra.mxu0 0.0
    %619 = vmatprep.subr.mxu0 0.0
    %620 = vmatpush2.msra.mxu0 0.0
    %621 = vmatprep.subr.mxu0 0.0
    %622 = vmatpush2.msra.mxu0 0.0
    %623 = vmatprep.subr.mxu0 0.0
    %624 = vmatpush2.msra.mxu0 0.0
    %625 = vmatprep.subr.mxu0 0.0
    %626 = vmatpush2.msra.mxu0 0.0
    %627 = vmatprep.subr.mxu0 0.0
    %628 = vmatpush2.msra.mxu0 0.0
    %629 = vmatprep.subr.mxu0 0.0
    %630 = vmatpush2.msra.mxu0 0.0
    %631 = vmatprep.subr.mxu0 0.0
    %632 = vmatpush2.msra.mxu0 0.0
    %633 = vmatprep.subr.mxu0 0.0
    %634 = vmatpush2.msra.mxu0 0.0
    %635 = vmatprep.subr.mxu0 0.0
    %636 = vmatpush2.msra.mxu0 0.0
    %637 = vmatprep.subr.mxu0 0.0
    %638 = vmatpush2.msra.mxu0 0.0
    %639 = vmatprep.subr.mxu0 0.0
    %640 = vmatpush2.msra.mxu0 0.0
    %641 = vmatprep.subr.mxu0 0.0
    %642 = vmatpush2.msra.mxu0 0.0
    %643 = vmatprep.subr.mxu0 0.0
    %644 = vmatpush2.msra.mxu0 0.0
    %645 = vmatprep.subr.mxu0 0.0
    %646 = vmatpush2.msra.mxu0 0.0
    %647 = vmatprep.mubr.f32.mxu0 0.0
    %648 = vmatmul.mubr.f32.gmra.mxu0 %v578
    %v649 = vpop.f32.mrf.mxu0
    %v650 = vadd.f32 0.0, %v649
    %v651 = vpop.f32.mrf.mxu0
    %652 = vmatprep.mubr.f32.mxu0 0.0
    %653 = vmatmul.mubr.f32.gmra.mxu0 %v581
    %v654 = vpop.f32.mrf.mxu0
    %v655 = vadd.f32 0.0, %v654
    %v656 = vpop.f32.mrf.mxu0
    %657 = vdwg.mxu0
    %v658 = vadd.f32 %v565, %v650
    %v659 = vadd.f32 %v570, %v655
    %v660 = vld [vmem:[#allocation5 + $0xa8] sm:$0xff]
    %v661 = vld [vmem:[#allocation5 + $0xb0] sm:$0xff]
    %v662 = vld [vmem:[#allocation5 + $0xb8] sm:$0xff]
    %v663 = vld [vmem:[#allocation5 + $0xc0] sm:$0xff]
    %v665 = vsel %vm78, %v407, 0
    %v668 = vsel %vm78, %v408, 0
    %670 = vmatprep.subr.mxu0 0.0
    %671 = vmatpush1.msra.mxu0 0.0
    %672 = vmatprep.subr.mxu0 0.0
    %673 = vmatpush1.msra.mxu0 0.0
    %674 = vmatprep.subr.mxu0 0.0
    %675 = vmatpush1.msra.mxu0 0.0
    %676 = vmatprep.subr.mxu0 0.0
    %677 = vmatpush1.msra.mxu0 0.0
    %678 = vmatprep.subr.mxu0 0.0
    %679 = vmatpush1.msra.mxu0 0.0
    %680 = vmatprep.subr.mxu0 0.0
    %681 = vmatpush1.msra.mxu0 0.0
    %682 = vmatprep.subr.mxu0 0.0
    %683 = vmatpush1.msra.mxu0 0.0
    %684 = vmatprep.subr.mxu0 0.0
    %685 = vmatpush1.msra.mxu0 0.0
    %686 = vmatprep.subr.mxu0 0.0
    %687 = vmatpush1.msra.mxu0 0.0
    %688 = vmatprep.subr.mxu0 0.0
    %689 = vmatpush1.msra.mxu0 0.0
    %690 = vmatprep.subr.mxu0 0.0
    %691 = vmatpush1.msra.mxu0 0.0
    %692 = vmatprep.subr.mxu0 0.0
    %693 = vmatpush1.msra.mxu0 0.0
    %694 = vmatprep.subr.mxu0 0.0
    %695 = vmatpush1.msra.mxu0 %v663
    %696 = vmatprep.subr.mxu0 0.0
    %697 = vmatpush1.msra.mxu0 %v662
    %698 = vmatprep.subr.mxu0 0.0
    %699 = vmatpush1.msra.mxu0 %v661
    %700 = vmatprep.subr.mxu0 0.0
    %701 = vmatpush1.msra.mxu0 %v660
    %702 = vmatprep.subr.mxu0 0.0
    %703 = vmatpush2.msra.mxu0 0.0
    %704 = vmatprep.subr.mxu0 0.0
    %705 = vmatpush2.msra.mxu0 0.0
    %706 = vmatprep.subr.mxu0 0.0
    %707 = vmatpush2.msra.mxu0 0.0
    %708 = vmatprep.subr.mxu0 0.0
    %709 = vmatpush2.msra.mxu0 0.0
    %710 = vmatprep.subr.mxu0 0.0
    %711 = vmatpush2.msra.mxu0 0.0
    %712 = vmatprep.subr.mxu0 0.0
    %713 = vmatpush2.msra.mxu0 0.0
    %714 = vmatprep.subr.mxu0 0.0
    %715 = vmatpush2.msra.mxu0 0.0
    %716 = vmatprep.subr.mxu0 0.0
    %717 = vmatpush2.msra.mxu0 0.0
    %718 = vmatprep.subr.mxu0 0.0
    %719 = vmatpush2.msra.mxu0 0.0
    %720 = vmatprep.subr.mxu0 0.0
    %721 = vmatpush2.msra.mxu0 0.0
    %722 = vmatprep.subr.mxu0 0.0
    %723 = vmatpush2.msra.mxu0 0.0
    %724 = vmatprep.subr.mxu0 0.0
    %725 = vmatpush2.msra.mxu0 0.0
    %726 = vmatprep.subr.mxu0 0.0
    %727 = vmatpush2.msra.mxu0 0.0
    %728 = vmatprep.subr.mxu0 0.0
    %729 = vmatpush2.msra.mxu0 0.0
    %730 = vmatprep.subr.mxu0 0.0
    %731 = vmatpush2.msra.mxu0 0.0
    %732 = vmatprep.subr.mxu0 0.0
    %733 = vmatpush2.msra.mxu0 0.0
    %734 = vmatprep.mubr.f32.mxu0 0.0
    %735 = vmatmul.mubr.f32.gmra.mxu0 %v665
    %v736 = vpop.f32.mrf.mxu0
    %v737 = vadd.f32 0.0, %v736
    %v738 = vpop.f32.mrf.mxu0
    %739 = vmatprep.mubr.f32.mxu0 0.0
    %740 = vmatmul.mubr.f32.gmra.mxu0 %v668
    %v741 = vpop.f32.mrf.mxu0
    %v742 = vadd.f32 0.0, %v741
    %v743 = vpop.f32.mrf.mxu0
    %744 = vdwg.mxu0
    %v745 = vadd.f32 %v658, %v737
    %v746 = vadd.f32 %v659, %v742
    %v747 = vld [vmem:[#allocation5 + $0xc8] sm:$0xff]
    %v748 = vld [vmem:[#allocation5 + $0xd0] sm:$0xff]
    %v749 = vld [vmem:[#allocation5 + $0xd8] sm:$0xff]
    %v750 = vld [vmem:[#allocation5 + $0xe0] sm:$0xff]
    %v752 = vsel %vm78, %v397, 0
    %v755 = vsel %vm78, %v404, 0
    %757 = vmatprep.subr.mxu0 0.0
    %758 = vmatpush1.msra.mxu0 0.0
    %759 = vmatprep.subr.mxu0 0.0
    %760 = vmatpush1.msra.mxu0 0.0
    %761 = vmatprep.subr.mxu0 0.0
    %762 = vmatpush1.msra.mxu0 0.0
    %763 = vmatprep.subr.mxu0 0.0
    %764 = vmatpush1.msra.mxu0 0.0
    %765 = vmatprep.subr.mxu0 0.0
    %766 = vmatpush1.msra.mxu0 0.0
    %767 = vmatprep.subr.mxu0 0.0
    %768 = vmatpush1.msra.mxu0 0.0
    %769 = vmatprep.subr.mxu0 0.0
    %770 = vmatpush1.msra.mxu0 0.0
    %771 = vmatprep.subr.mxu0 0.0
    %772 = vmatpush1.msra.mxu0 0.0
    %773 = vmatprep.subr.mxu0 0.0
    %774 = vmatpush1.msra.mxu0 0.0
    %775 = vmatprep.subr.mxu0 0.0
    %776 = vmatpush1.msra.mxu0 0.0
    %777 = vmatprep.subr.mxu0 0.0
    %778 = vmatpush1.msra.mxu0 0.0
    %779 = vmatprep.subr.mxu0 0.0
    %780 = vmatpush1.msra.mxu0 0.0
    %781 = vmatprep.subr.mxu0 0.0
    %782 = vmatpush1.msra.mxu0 %v750
    %783 = vmatprep.subr.mxu0 0.0
    %784 = vmatpush1.msra.mxu0 %v749
    %785 = vmatprep.subr.mxu0 0.0
    %786 = vmatpush1.msra.mxu0 %v748
    %787 = vmatprep.subr.mxu0 0.0
    %788 = vmatpush1.msra.mxu0 %v747
    %789 = vmatprep.subr.mxu0 0.0
    %790 = vmatpush2.msra.mxu0 0.0
    %791 = vmatprep.subr.mxu0 0.0
    %792 = vmatpush2.msra.mxu0 0.0
    %793 = vmatprep.subr.mxu0 0.0
    %794 = vmatpush2.msra.mxu0 0.0
    %795 = vmatprep.subr.mxu0 0.0
    %796 = vmatpush2.msra.mxu0 0.0
    %797 = vmatprep.subr.mxu0 0.0
    %798 = vmatpush2.msra.mxu0 0.0
    %799 = vmatprep.subr.mxu0 0.0
    %800 = vmatpush2.msra.mxu0 0.0
    %801 = vmatprep.subr.mxu0 0.0
    %802 = vmatpush2.msra.mxu0 0.0
    %803 = vmatprep.subr.mxu0 0.0
    %804 = vmatpush2.msra.mxu0 0.0
    %805 = vmatprep.subr.mxu0 0.0
    %806 = vmatpush2.msra.mxu0 0.0
    %807 = vmatprep.subr.mxu0 0.0
    %808 = vmatpush2.msra.mxu0 0.0
    %809 = vmatprep.subr.mxu0 0.0
    %810 = vmatpush2.msra.mxu0 0.0
    %811 = vmatprep.subr.mxu0 0.0
    %812 = vmatpush2.msra.mxu0 0.0
    %813 = vmatprep.subr.mxu0 0.0
    %814 = vmatpush2.msra.mxu0 0.0
    %815 = vmatprep.subr.mxu0 0.0
    %816 = vmatpush2.msra.mxu0 0.0
    %817 = vmatprep.subr.mxu0 0.0
    %818 = vmatpush2.msra.mxu0 0.0
    %819 = vmatprep.subr.mxu0 0.0
    %820 = vmatpush2.msra.mxu0 0.0
    %821 = vmatprep.mubr.f32.mxu0 0.0
    %822 = vmatmul.mubr.f32.gmra.mxu0 %v752
    %v823 = vpop.f32.mrf.mxu0
    %v824 = vadd.f32 0.0, %v823
    %v825 = vpop.f32.mrf.mxu0
    %826 = vmatprep.mubr.f32.mxu0 0.0
    %827 = vmatmul.mubr.f32.gmra.mxu0 %v755
    %v828 = vpop.f32.mrf.mxu0
    %v829 = vadd.f32 0.0, %v828
    %v830 = vpop.f32.mrf.mxu0
    %831 = vdwg.mxu0
    %v832 = vadd.f32 %v745, %v824
    %v833 = vadd.f32 %v746, %v829
    %836 = vrot.lane.b32.xlu0 %v832, 112
    %v837 = vpop.permute.xlu0 %836
    %838 = vrot.lane.b32.xlu0 %v833, 112
    %v839 = vpop.permute.xlu0 %838
    %v842 = vmul.f32 %v63, %v837
    %v843 = vmul.f32 %v64, %v839
    %v844 = vadd.f32 %v832, %v842
    %v845 = vadd.f32 %v833, %v843
    %846 = vrot.lane.b32.xlu0 %v832, 96
    %v847 = vpop.permute.xlu0 %846
    %848 = vrot.lane.b32.xlu0 %v833, 96
    %v849 = vpop.permute.xlu0 %848
    %v852 = vmul.f32 %v66, %v847
    %v853 = vmul.f32 %v68, %v849
    %v854 = vadd.f32 %v844, %v852
    %v855 = vadd.f32 %v845, %v853
    %v856 = vld [vmem:[#allocation5 + $0xe8] sm:$0x1]
    %v857 = vlaneseq
    %v858 = vshrl.u32 %v857, 7
    %v859 = vsub.s32 0, %v858
    %v860 = vrot.slane %v856, %v859
    %v861 = vadd.f32 %v854, %v860
    %v862 = vadd.f32 %v855, %v860
    %v863 = vld [vmem:[#allocation5 + $0xf0] sm:$0xff]
    %v864 = vld [vmem:[#allocation5 + $0xf8] sm:$0xff]
    %v865 = vld [vmem:[#allocation5 + $0x100] sm:$0x1]
    %v866 = vlaneseq
    %v867 = vshrl.u32 %v866, 7
    %v868 = vsub.s32 0, %v867
    %v869 = vrot.slane %v865, %v868
    %v871 = vsel %vm239, %v861, 0
    %v874 = vsel %vm239, %v862, 0
    %876 = vmatprep.subr.mxu0 0.0
    %877 = vmatpush1.msra.mxu0 0.0
    %878 = vmatprep.subr.mxu0 0.0
    %879 = vmatpush1.msra.mxu0 0.0
    %880 = vmatprep.subr.mxu0 0.0
    %881 = vmatpush1.msra.mxu0 0.0
    %882 = vmatprep.subr.mxu0 0.0
    %883 = vmatpush1.msra.mxu0 0.0
    %884 = vmatprep.subr.mxu0 0.0
    %885 = vmatpush1.msra.mxu0 0.0
    %886 = vmatprep.subr.mxu0 0.0
    %887 = vmatpush1.msra.mxu0 0.0
    %888 = vmatprep.subr.mxu0 0.0
    %889 = vmatpush1.msra.mxu0 0.0
    %890 = vmatprep.subr.mxu0 0.0
    %891 = vmatpush1.msra.mxu0 0.0
    %892 = vmatprep.subr.mxu0 0.0
    %893 = vmatpush1.msra.mxu0 0.0
    %894 = vmatprep.subr.mxu0 0.0
    %895 = vmatpush1.msra.mxu0 0.0
    %896 = vmatprep.subr.mxu0 0.0
    %897 = vmatpush1.msra.mxu0 0.0
    %898 = vmatprep.subr.mxu0 0.0
    %899 = vmatpush1.msra.mxu0 0.0
    %900 = vmatprep.subr.mxu0 0.0
    %901 = vmatpush1.msra.mxu0 0.0
    %902 = vmatprep.subr.mxu0 0.0
    %903 = vmatpush1.msra.mxu0 0.0
    %904 = vmatprep.subr.mxu0 0.0
    %905 = vmatpush1.msra.mxu0 %v864
    %906 = vmatprep.subr.mxu0 0.0
    %907 = vmatpush1.msra.mxu0 %v863
    %908 = vmatprep.subr.mxu0 0.0
    %909 = vmatpush2.msra.mxu0 0.0
    %910 = vmatprep.subr.mxu0 0.0
    %911 = vmatpush2.msra.mxu0 0.0
    %912 = vmatprep.subr.mxu0 0.0
    %913 = vmatpush2.msra.mxu0 0.0
    %914 = vmatprep.subr.mxu0 0.0
    %915 = vmatpush2.msra.mxu0 0.0
    %916 = vmatprep.subr.mxu0 0.0
    %917 = vmatpush2.msra.mxu0 0.0
    %918 = vmatprep.subr.mxu0 0.0
    %919 = vmatpush2.msra.mxu0 0.0
    %920 = vmatprep.subr.mxu0 0.0
    %921 = vmatpush2.msra.mxu0 0.0
    %922 = vmatprep.subr.mxu0 0.0
    %923 = vmatpush2.msra.mxu0 0.0
    %924 = vmatprep.subr.mxu0 0.0
    %925 = vmatpush2.msra.mxu0 0.0
    %926 = vmatprep.subr.mxu0 0.0
    %927 = vmatpush2.msra.mxu0 0.0
    %928 = vmatprep.subr.mxu0 0.0
    %929 = vmatpush2.msra.mxu0 0.0
    %930 = vmatprep.subr.mxu0 0.0
    %931 = vmatpush2.msra.mxu0 0.0
    %932 = vmatprep.subr.mxu0 0.0
    %933 = vmatpush2.msra.mxu0 0.0
    %934 = vmatprep.subr.mxu0 0.0
    %935 = vmatpush2.msra.mxu0 0.0
    %936 = vmatprep.subr.mxu0 0.0
    %937 = vmatpush2.msra.mxu0 0.0
    %938 = vmatprep.subr.mxu0 0.0
    %939 = vmatpush2.msra.mxu0 0.0
    %940 = vmatprep.mubr.f32.mxu0 0.0
    %941 = vmatmul.mubr.f32.gmra.mxu0 %v871
    %v942 = vpop.f32.mrf.mxu0
    %v943 = vadd.f32 %v869, %v942
    %v944 = vpop.f32.mrf.mxu0
    %945 = vmatprep.mubr.f32.mxu0 0.0
    %946 = vmatmul.mubr.f32.gmra.mxu0 %v874
    %v947 = vpop.f32.mrf.mxu0
    %v948 = vadd.f32 %v869, %v947
    %v949 = vpop.f32.mrf.mxu0
    %950 = vdwg.mxu0
    %v951 = vmax.f32 %v943, 0.0
    %v952 = vmax.f32 %v948, 0.0
    %v953 = vld [vmem:[#allocation5 + $0x108] sm:$0xff]
    %v954 = vld [vmem:[#allocation5 + $0x110] sm:$0xff]
    %v955 = vld [vmem:[#allocation5 + $0x128] sm:$0x1]
    %v956 = vlaneseq
    %v957 = vshrl.u32 %v956, 7
    %v958 = vsub.s32 0, %v957
    %v959 = vrot.slane %v955, %v958
    %v961 = vsel %vm239, %v951, 0
    %v964 = vsel %vm239, %v952, 0
    %966 = vmatprep.subr.mxu0 0.0
    %967 = vmatpush1.msra.mxu0 0.0
    %968 = vmatprep.subr.mxu0 0.0
    %969 = vmatpush1.msra.mxu0 0.0
    %970 = vmatprep.subr.mxu0 0.0
    %971 = vmatpush1.msra.mxu0 0.0
    %972 = vmatprep.subr.mxu0 0.0
    %973 = vmatpush1.msra.mxu0 0.0
    %974 = vmatprep.subr.mxu0 0.0
    %975 = vmatpush1.msra.mxu0 0.0
    %976 = vmatprep.subr.mxu0 0.0
    %977 = vmatpush1.msra.mxu0 0.0
    %978 = vmatprep.subr.mxu0 0.0
    %979 = vmatpush1.msra.mxu0 0.0
    %980 = vmatprep.subr.mxu0 0.0
    %981 = vmatpush1.msra.mxu0 0.0
    %982 = vmatprep.subr.mxu0 0.0
    %983 = vmatpush1.msra.mxu0 0.0
    %984 = vmatprep.subr.mxu0 0.0
    %985 = vmatpush1.msra.mxu0 0.0
    %986 = vmatprep.subr.mxu0 0.0
    %987 = vmatpush1.msra.mxu0 0.0
    %988 = vmatprep.subr.mxu0 0.0
    %989 = vmatpush1.msra.mxu0 0.0
    %990 = vmatprep.subr.mxu0 0.0
    %991 = vmatpush1.msra.mxu0 0.0
    %992 = vmatprep.subr.mxu0 0.0
    %993 = vmatpush1.msra.mxu0 0.0
    %994 = vmatprep.subr.mxu0 0.0
    %995 = vmatpush1.msra.mxu0 %v954
    %996 = vmatprep.subr.mxu0 0.0
    %997 = vmatpush1.msra.mxu0 %v953
    %998 = vmatprep.subr.mxu0 0.0
    %999 = vmatpush2.msra.mxu0 0.0
    %1000 = vmatprep.subr.mxu0 0.0
    %1001 = vmatpush2.msra.mxu0 0.0
    %1002 = vmatprep.subr.mxu0 0.0
    %1003 = vmatpush2.msra.mxu0 0.0
    %1004 = vmatprep.subr.mxu0 0.0
    %1005 = vmatpush2.msra.mxu0 0.0
    %1006 = vmatprep.subr.mxu0 0.0
    %1007 = vmatpush2.msra.mxu0 0.0
    %1008 = vmatprep.subr.mxu0 0.0
    %1009 = vmatpush2.msra.mxu0 0.0
    %1010 = vmatprep.subr.mxu0 0.0
    %1011 = vmatpush2.msra.mxu0 0.0
    %1012 = vmatprep.subr.mxu0 0.0
    %1013 = vmatpush2.msra.mxu0 0.0
    %1014 = vmatprep.subr.mxu0 0.0
    %1015 = vmatpush2.msra.mxu0 0.0
    %1016 = vmatprep.subr.mxu0 0.0
    %1017 = vmatpush2.msra.mxu0 0.0
    %1018 = vmatprep.subr.mxu0 0.0
    %1019 = vmatpush2.msra.mxu0 0.0
    %1020 = vmatprep.subr.mxu0 0.0
    %1021 = vmatpush2.msra.mxu0 0.0
    %1022 = vmatprep.subr.mxu0 0.0
    %1023 = vmatpush2.msra.mxu0 0.0
    %1024 = vmatprep.subr.mxu0 0.0
    %1025 = vmatpush2.msra.mxu0 0.0
    %1026 = vmatprep.subr.mxu0 0.0
    %1027 = vmatpush2.msra.mxu0 0.0
    %1028 = vmatprep.subr.mxu0 0.0
    %1029 = vmatpush2.msra.mxu0 0.0
    %1030 = vmatprep.mubr.f32.mxu0 0.0
    %1031 = vmatmul.mubr.f32.gmra.mxu0 %v961
    %v1032 = vpop.f32.mrf.mxu0
    %v1033 = vadd.f32 %v959, %v1032
    %v1034 = vpop.f32.mrf.mxu0
    %1035 = vmatprep.mubr.f32.mxu0 0.0
    %1036 = vmatmul.mubr.f32.gmra.mxu0 %v964
    %v1037 = vpop.f32.mrf.mxu0
    %v1038 = vadd.f32 %v959, %v1037
    %v1039 = vpop.f32.mrf.mxu0
    %1040 = vdwg.mxu0
    %v1041 = vld [vmem:[#allocation5 + $0x118] sm:$0xff]
    %v1042 = vld [vmem:[#allocation5 + $0x120] sm:$0xff]
    %1043 = vmatprep.subr.mxu0 0.0
    %1044 = vmatpush1.msra.mxu0 0.0
    %1045 = vmatprep.subr.mxu0 0.0
    %1046 = vmatpush1.msra.mxu0 0.0
    %1047 = vmatprep.subr.mxu0 0.0
    %1048 = vmatpush1.msra.mxu0 0.0
    %1049 = vmatprep.subr.mxu0 0.0
    %1050 = vmatpush1.msra.mxu0 0.0
    %1051 = vmatprep.subr.mxu0 0.0
    %1052 = vmatpush1.msra.mxu0 0.0
    %1053 = vmatprep.subr.mxu0 0.0
    %1054 = vmatpush1.msra.mxu0 0.0
    %1055 = vmatprep.subr.mxu0 0.0
    %1056 = vmatpush1.msra.mxu0 0.0
    %1057 = vmatprep.subr.mxu0 0.0
    %1058 = vmatpush1.msra.mxu0 0.0
    %1059 = vmatprep.subr.mxu0 0.0
    %1060 = vmatpush1.msra.mxu0 0.0
    %1061 = vmatprep.subr.mxu0 0.0
    %1062 = vmatpush1.msra.mxu0 0.0
    %1063 = vmatprep.subr.mxu0 0.0
    %1064 = vmatpush1.msra.mxu0 0.0
    %1065 = vmatprep.subr.mxu0 0.0
    %1066 = vmatpush1.msra.mxu0 0.0
    %1067 = vmatprep.subr.mxu0 0.0
    %1068 = vmatpush1.msra.mxu0 0.0
    %1069 = vmatprep.subr.mxu0 0.0
    %1070 = vmatpush1.msra.mxu0 0.0
    %1071 = vmatprep.subr.mxu0 0.0
    %1072 = vmatpush1.msra.mxu0 %v1042
    %1073 = vmatprep.subr.mxu0 0.0
    %1074 = vmatpush1.msra.mxu0 %v1041
    %1075 = vmatprep.subr.mxu0 0.0
    %1076 = vmatpush2.msra.mxu0 0.0
    %1077 = vmatprep.subr.mxu0 0.0
    %1078 = vmatpush2.msra.mxu0 0.0
    %1079 = vmatprep.subr.mxu0 0.0
    %1080 = vmatpush2.msra.mxu0 0.0
    %1081 = vmatprep.subr.mxu0 0.0
    %1082 = vmatpush2.msra.mxu0 0.0
    %1083 = vmatprep.subr.mxu0 0.0
    %1084 = vmatpush2.msra.mxu0 0.0
    %1085 = vmatprep.subr.mxu0 0.0
    %1086 = vmatpush2.msra.mxu0 0.0
    %1087 = vmatprep.subr.mxu0 0.0
    %1088 = vmatpush2.msra.mxu0 0.0
    %1089 = vmatprep.subr.mxu0 0.0
    %1090 = vmatpush2.msra.mxu0 0.0
    %1091 = vmatprep.subr.mxu0 0.0
    %1092 = vmatpush2.msra.mxu0 0.0
    %1093 = vmatprep.subr.mxu0 0.0
    %1094 = vmatpush2.msra.mxu0 0.0
    %1095 = vmatprep.subr.mxu0 0.0
    %1096 = vmatpush2.msra.mxu0 0.0
    %1097 = vmatprep.subr.mxu0 0.0
    %1098 = vmatpush2.msra.mxu0 0.0
    %1099 = vmatprep.subr.mxu0 0.0
    %1100 = vmatpush2.msra.mxu0 0.0
    %1101 = vmatprep.subr.mxu0 0.0
    %1102 = vmatpush2.msra.mxu0 0.0
    %1103 = vmatprep.subr.mxu0 0.0
    %1104 = vmatpush2.msra.mxu0 0.0
    %1105 = vmatprep.subr.mxu0 0.0
    %1106 = vmatpush2.msra.mxu0 0.0
    %1107 = vmatprep.mubr.f32.mxu0 0.0
    %1108 = vmatmul.mubr.f32.gmra.mxu0 %v961
    %v1109 = vpop.f32.mrf.mxu0
    %v1110 = vadd.f32 0.0, %v1109
    %v1111 = vpop.f32.mrf.mxu0
    %1112 = vmatprep.mubr.f32.mxu0 0.0
    %1113 = vmatmul.mubr.f32.gmra.mxu0 %v964
    %v1114 = vpop.f32.mrf.mxu0
    %v1115 = vadd.f32 0.0, %v1114
    %v1116 = vpop.f32.mrf.mxu0
    %1117 = vdwg.mxu0
    %1118 = vmatprep.subr.mxu0 0.0
    %1119 = vmatpush1.msra.mxu0 0.0
    %1120 = vmatprep.subr.mxu0 0.0
    %1121 = vmatpush1.msra.mxu0 0.0
    %1122 = vmatprep.subr.mxu0 0.0
    %1123 = vmatpush1.msra.mxu0 0.0
    %1124 = vmatprep.subr.mxu0 0.0
    %1125 = vmatpush1.msra.mxu0 0.0
    %1126 = vmatprep.subr.mxu0 0.0
    %1127 = vmatpush1.msra.mxu0 0.0
    %1128 = vmatprep.subr.mxu0 0.0
    %1129 = vmatpush1.msra.mxu0 0.0
    %1130 = vmatprep.subr.mxu0 0.0
    %1131 = vmatpush1.msra.mxu0 0.0
    %1132 = vmatprep.subr.mxu0 0.0
    %1133 = vmatpush1.msra.mxu0 0.0
    %1134 = vmatprep.subr.mxu0 0.0
    %1135 = vmatpush1.msra.mxu0 0.0
    %1136 = vmatprep.subr.mxu0 0.0
    %1137 = vmatpush1.msra.mxu0 0.0
    %1138 = vmatprep.subr.mxu0 0.0
    %1139 = vmatpush1.msra.mxu0 0.0
    %1140 = vmatprep.subr.mxu0 0.0
    %1141 = vmatpush1.msra.mxu0 0.0
    %1142 = vmatprep.subr.mxu0 0.0
    %1143 = vmatpush1.msra.mxu0 0.0
    %1144 = vmatprep.subr.mxu0 0.0
    %1145 = vmatpush1.msra.mxu0 0.0
    %1146 = vmatprep.subr.mxu0 0.0
    %1147 = vmatpush1.msra.mxu0 %v1115
    %1148 = vmatprep.subr.mxu0 0.0
    %1149 = vmatpush1.msra.mxu0 %v1110
    %1150 = vmatprep.subr.mxu0 0.0
    %1151 = vmatpush2.msra.mxu0 0.0
    %1152 = vmatprep.subr.mxu0 0.0
    %1153 = vmatpush2.msra.mxu0 0.0
    %1154 = vmatprep.subr.mxu0 0.0
    %1155 = vmatpush2.msra.mxu0 0.0
    %1156 = vmatprep.subr.mxu0 0.0
    %1157 = vmatpush2.msra.mxu0 0.0
    %1158 = vmatprep.subr.mxu0 0.0
    %1159 = vmatpush2.msra.mxu0 0.0
    %1160 = vmatprep.subr.mxu0 0.0
    %1161 = vmatpush2.msra.mxu0 0.0
    %1162 = vmatprep.subr.mxu0 0.0
    %1163 = vmatpush2.msra.mxu0 0.0
    %1164 = vmatprep.subr.mxu0 0.0
    %1165 = vmatpush2.msra.mxu0 0.0
    %1166 = vmatprep.subr.mxu0 0.0
    %1167 = vmatpush2.msra.mxu0 0.0
    %1168 = vmatprep.subr.mxu0 0.0
    %1169 = vmatpush2.msra.mxu0 0.0
    %1170 = vmatprep.subr.mxu0 0.0
    %1171 = vmatpush2.msra.mxu0 0.0
    %1172 = vmatprep.subr.mxu0 0.0
    %1173 = vmatpush2.msra.mxu0 0.0
    %1174 = vmatprep.subr.mxu0 0.0
    %1175 = vmatpush2.msra.mxu0 0.0
    %1176 = vmatprep.subr.mxu0 0.0
    %1177 = vmatpush2.msra.mxu0 0.0
    %1178 = vmatprep.subr.mxu0 0.0
    %1179 = vmatpush2.msra.mxu0 0.0
    %1180 = vmatprep.subr.mxu0 0.0
    %1181 = vmatpush2.msra.mxu0 0.0
    %1182 = vmatprep.mubr.f32.mxu0 0.0
    %1183 = vmatmul.mubr.f32.gmra.mxu0 %v241
    %v1184 = vpop.f32.mrf.mxu0
    %v1185 = vadd.f32 0.0, %v1184
    %v1186 = vpop.f32.mrf.mxu0
    %1187 = vmatprep.mubr.f32.mxu0 0.0
    %1188 = vmatmul.mubr.f32.gmra.mxu0 %v244
    %v1189 = vpop.f32.mrf.mxu0
    %v1190 = vadd.f32 0.0, %v1189
    %v1191 = vpop.f32.mrf.mxu0
    %1192 = vmatprep.mubr.f32.mxu0 0.0
    %1193 = vmatmul.mubr.f32.gmra.mxu0 %v247
    %v1194 = vpop.f32.mrf.mxu0
    %v1195 = vadd.f32 0.0, %v1194
    %v1196 = vpop.f32.mrf.mxu0
    %1197 = vmatprep.mubr.f32.mxu0 0.0
    %1198 = vmatmul.mubr.f32.gmra.mxu0 %v250
    %v1199 = vpop.f32.mrf.mxu0
    %v1200 = vadd.f32 0.0, %v1199
    %v1201 = vpop.f32.mrf.mxu0
    %1202 = vdwg.mxu0
    %v1203 = vadd.f32 %v1033, %v1185
    %v1204 = vadd.f32 %v1038, %v1190
    %v1205 = vsel %vm55, %v1203, 0.0
    %v1206 = vsel %vm56, %v1204, 0.0
    %v1207 = vadd.f32 %v1205, 0.0
    %v1208 = vadd.f32 %v1206, 0.0
    %v1209 = vmul.f32 %v1203, %v1203
    %v1210 = vmul.f32 %v1204, %v1204
    %v1211 = vsel %vm55, %v1209, 0.0
    %v1212 = vsel %vm56, %v1210, 0.0
    %v1213 = vadd.f32 %v1211, 0.0
    %v1214 = vadd.f32 %v1212, 0.0
    %v1215 = vmin.f32 %v1203, 1e+30
    %v1216 = vmin.f32 %v1204, 1e+30
    %v1217 = vsel %vm55, %v1215, 1e+30
    %v1218 = vsel %vm56, %v1216, 1e+30
    %v1219 = vmax.f32 %v1203, -1e+30
    %v1220 = vmax.f32 %v1204, -1e+30
    %v1221 = vsel %vm55, %v1219, -1e+30
    %v1222 = vsel %vm56, %v1220, -1e+30
    %v1223 = vadd.f32 %v1033, %v1195
    %v1224 = vadd.f32 %v1038, %v1200
    %v1225 = vsel %vm359, %v1223, 0.0
    %v1226 = vsel %vm360, %v1224, 0.0
    %v1227 = vadd.f32 %v1207, %v1225
    %v1228 = vadd.f32 %v1208, %v1226
    %v1229 = vmul.f32 %v1223, %v1223
    %v1230 = vmul.f32 %v1224, %v1224
    %v1231 = vsel %vm359, %v1229, 0.0
    %v1232 = vsel %vm360, %v1230, 0.0
    %v1233 = vadd.f32 %v1213, %v1231
    %v1234 = vadd.f32 %v1214, %v1232
    %v1235 = vmin.f32 %v1217, %v1223
    %v1236 = vmin.f32 %v1218, %v1224
    %v1237 = vsel %vm359, %v1235, %v1217
    %v1238 = vsel %vm360, %v1236, %v1218
    %v1239 = vmax.f32 %v1221, %v1223
    %v1240 = vmax.f32 %v1222, %v1224
    %v1241 = vsel %vm359, %v1239, %v1221
    %v1242 = vsel %vm360, %v1240, %v1222
    %v1243 = vmul.f32 %v1227, %v52
    %v1244 = vmul.f32 %v1228, %v54
    %v1245 = vmul.f32 %v1233, %v52
    %v1246 = vmul.f32 %v1234, %v54
    %v1247 = vmul.f32 %v1243, %v1243
    %v1248 = vmul.f32 %v1244, %v1244
    %v1249 = vsub.f32 %v1245, %v1247
    %v1250 = vsub.f32 %v1246, %v1248
    %v1251 = vmax.f32 %v1249, 0.0
    %v1252 = vmax.f32 %v1250, 0.0
    %v1253 = vadd.f32 %v1251, 1e-05
    %v1254 = vadd.f32 %v1252, 1e-05
    %v1255 = vrsqrt.pop %v1253
    %v1256 = vmul.f32 %v1253, %v1255
    %vm1257 = vcmp.eq.f32.partialorder %v1253, inf
    %v1258 = vsel %vm1257, %v1253, %v1256
    %vm1259 = vcmp.eq.f32.partialorder %v1253, 0.0
    %v1260 = vand.u32 %v1253, 2147483648
    %v1261 = vsel %vm1259, %v1260, %v1258
    %v1262 = vrsqrt.pop %v1254
    %v1263 = vmul.f32 %v1254, %v1262
    %vm1264 = vcmp.eq.f32.partialorder %v1254, inf
    %v1265 = vsel %vm1264, %v1254, %v1263
    %vm1266 = vcmp.eq.f32.partialorder %v1254, 0.0
    %v1267 = vand.u32 %v1254, 2147483648
    %v1268 = vsel %vm1266, %v1267, %v1265
    %v1269 = vsel %vm55, %v1237, 0.0
    %v1270 = vsel %vm56, %v1238, 0.0
    %v1271 = vsel %vm55, %v1241, 0.0
    %v1272 = vsel %vm56, %v1242, 0.0
    %v1273 = vld [vmem:[#allocation5 + $0x130] sm:$0xff]
    %v1274 = vld [vmem:[#allocation5 + $0x138] sm:$0xff]
    %v1275 = vld [vmem:[#allocation5 + $0x140] sm:$0xff]
    %v1276 = vld [vmem:[#allocation5 + $0x148] sm:$0xff]
    %v1278 = vsel %vm239, %v1243, 0
    %v1281 = vsel %vm239, %v1244, 0
    %1283 = vmatprep.subr.mxu0 0.0
    %1284 = vmatpush1.msra.mxu0 0.0
    %1285 = vmatprep.subr.mxu0 0.0
    %1286 = vmatpush1.msra.mxu0 0.0
    %1287 = vmatprep.subr.mxu0 0.0
    %1288 = vmatpush1.msra.mxu0 0.0
    %1289 = vmatprep.subr.mxu0 0.0
    %1290 = vmatpush1.msra.mxu0 0.0
    %1291 = vmatprep.subr.mxu0 0.0
    %1292 = vmatpush1.msra.mxu0 0.0
    %1293 = vmatprep.subr.mxu0 0.0
    %1294 = vmatpush1.msra.mxu0 0.0
    %1295 = vmatprep.subr.mxu0 0.0
    %1296 = vmatpush1.msra.mxu0 0.0
    %1297 = vmatprep.subr.mxu0 0.0
    %1298 = vmatpush1.msra.mxu0 0.0
    %1299 = vmatprep.subr.mxu0 0.0
    %1300 = vmatpush1.msra.mxu0 0.0
    %1301 = vmatprep.subr.mxu0 0.0
    %1302 = vmatpush1.msra.mxu0 0.0
    %1303 = vmatprep.subr.mxu0 0.0
    %1304 = vmatpush1.msra.mxu0 0.0
    %1305 = vmatprep.subr.mxu0 0.0
    %1306 = vmatpush1.msra.mxu0 0.0
    %1307 = vmatprep.subr.mxu0 0.0
    %1308 = vmatpush1.msra.mxu0 0.0
    %1309 = vmatprep.subr.mxu0 0.0
    %1310 = vmatpush1.msra.mxu0 0.0
    %1311 = vmatprep.subr.mxu0 0.0
    %1312 = vmatpush1.msra.mxu0 %v1276
    %1313 = vmatprep.subr.mxu0 0.0
    %1314 = vmatpush1.msra.mxu0 %v1275
    %1315 = vmatprep.subr.mxu0 0.0
    %1316 = vmatpush2.msra.mxu0 0.0
    %1317 = vmatprep.subr.mxu0 0.0
    %1318 = vmatpush2.msra.mxu0 0.0
    %1319 = vmatprep.subr.mxu0 0.0
    %1320 = vmatpush2.msra.mxu0 0.0
    %1321 = vmatprep.subr.mxu0 0.0
    %1322 = vmatpush2.msra.mxu0 0.0
    %1323 = vmatprep.subr.mxu0 0.0
    %1324 = vmatpush2.msra.mxu0 0.0
    %1325 = vmatprep.subr.mxu0 0.0
    %1326 = vmatpush2.msra.mxu0 0.0
    %1327 = vmatprep.subr.mxu0 0.0
    %1328 = vmatpush2.msra.mxu0 0.0
    %1329 = vmatprep.subr.mxu0 0.0
    %1330 = vmatpush2.msra.mxu0 0.0
    %1331 = vmatprep.subr.mxu0 0.0
    %1332 = vmatpush2.msra.mxu0 0.0
    %1333 = vmatprep.subr.mxu0 0.0
    %1334 = vmatpush2.msra.mxu0 0.0
    %1335 = vmatprep.subr.mxu0 0.0
    %1336 = vmatpush2.msra.mxu0 0.0
    %1337 = vmatprep.subr.mxu0 0.0
    %1338 = vmatpush2.msra.mxu0 0.0
    %1339 = vmatprep.subr.mxu0 0.0
    %1340 = vmatpush2.msra.mxu0 0.0
    %1341 = vmatprep.subr.mxu0 0.0
    %1342 = vmatpush2.msra.mxu0 0.0
    %1343 = vmatprep.subr.mxu0 0.0
    %1344 = vmatpush2.msra.mxu0 0.0
    %1345 = vmatprep.subr.mxu0 0.0
    %1346 = vmatpush2.msra.mxu0 0.0
    %1347 = vmatprep.mubr.f32.mxu0 0.0
    %1348 = vmatmul.mubr.f32.gmra.mxu0 %v1278
    %v1349 = vpop.f32.mrf.mxu0
    %v1350 = vadd.f32 0.0, %v1349
    %v1351 = vpop.f32.mrf.mxu0
    %1352 = vmatprep.mubr.f32.mxu0 0.0
    %1353 = vmatmul.mubr.f32.gmra.mxu0 %v1281
    %v1354 = vpop.f32.mrf.mxu0
    %v1355 = vadd.f32 0.0, %v1354
    %v1356 = vpop.f32.mrf.mxu0
    %1357 = vdwg.mxu0
    %1358 = vmatprep.subr.mxu0 0.0
    %1359 = vmatpush1.msra.mxu0 0.0
    %1360 = vmatprep.subr.mxu0 0.0
    %1361 = vmatpush1.msra.mxu0 0.0
    %1362 = vmatprep.subr.mxu0 0.0
    %1363 = vmatpush1.msra.mxu0 0.0
    %1364 = vmatprep.subr.mxu0 0.0
    %1365 = vmatpush1.msra.mxu0 0.0
    %1366 = vmatprep.subr.mxu0 0.0
    %1367 = vmatpush1.msra.mxu0 0.0
    %1368 = vmatprep.subr.mxu0 0.0
    %1369 = vmatpush1.msra.mxu0 0.0
    %1370 = vmatprep.subr.mxu0 0.0
    %1371 = vmatpush1.msra.mxu0 0.0
    %1372 = vmatprep.subr.mxu0 0.0
    %1373 = vmatpush1.msra.mxu0 0.0
    %1374 = vmatprep.subr.mxu0 0.0
    %1375 = vmatpush1.msra.mxu0 0.0
    %1376 = vmatprep.subr.mxu0 0.0
    %1377 = vmatpush1.msra.mxu0 0.0
    %1378 = vmatprep.subr.mxu0 0.0
    %1379 = vmatpush1.msra.mxu0 0.0
    %1380 = vmatprep.subr.mxu0 0.0
    %1381 = vmatpush1.msra.mxu0 0.0
    %1382 = vmatprep.subr.mxu0 0.0
    %1383 = vmatpush1.msra.mxu0 0.0
    %1384 = vmatprep.subr.mxu0 0.0
    %1385 = vmatpush1.msra.mxu0 0.0
    %1386 = vmatprep.subr.mxu0 0.0
    %1387 = vmatpush1.msra.mxu0 %v1274
    %1388 = vmatprep.subr.mxu0 0.0
    %1389 = vmatpush1.msra.mxu0 %v1273
    %1390 = vmatprep.subr.mxu0 0.0
    %1391 = vmatpush2.msra.mxu0 0.0
    %1392 = vmatprep.subr.mxu0 0.0
    %1393 = vmatpush2.msra.mxu0 0.0
    %1394 = vmatprep.subr.mxu0 0.0
    %1395 = vmatpush2.msra.mxu0 0.0
    %1396 = vmatprep.subr.mxu0 0.0
    %1397 = vmatpush2.msra.mxu0 0.0
    %1398 = vmatprep.subr.mxu0 0.0
    %1399 = vmatpush2.msra.mxu0 0.0
    %1400 = vmatprep.subr.mxu0 0.0
    %1401 = vmatpush2.msra.mxu0 0.0
    %1402 = vmatprep.subr.mxu0 0.0
    %1403 = vmatpush2.msra.mxu0 0.0
    %1404 = vmatprep.subr.mxu0 0.0
    %1405 = vmatpush2.msra.mxu0 0.0
    %1406 = vmatprep.subr.mxu0 0.0
    %1407 = vmatpush2.msra.mxu0 0.0
    %1408 = vmatprep.subr.mxu0 0.0
    %1409 = vmatpush2.msra.mxu0 0.0
    %1410 = vmatprep.subr.mxu0 0.0
    %1411 = vmatpush2.msra.mxu0 0.0
    %1412 = vmatprep.subr.mxu0 0.0
    %1413 = vmatpush2.msra.mxu0 0.0
    %1414 = vmatprep.subr.mxu0 0.0
    %1415 = vmatpush2.msra.mxu0 0.0
    %1416 = vmatprep.subr.mxu0 0.0
    %1417 = vmatpush2.msra.mxu0 0.0
    %1418 = vmatprep.subr.mxu0 0.0
    %1419 = vmatpush2.msra.mxu0 0.0
    %1420 = vmatprep.subr.mxu0 0.0
    %1421 = vmatpush2.msra.mxu0 0.0
    %1422 = vmatprep.mubr.f32.mxu0 0.0
    %1423 = vmatmul.mubr.f32.gmra.mxu0 %v961
    %v1424 = vpop.f32.mrf.mxu0
    %v1425 = vadd.f32 %v1350, %v1424
    %v1426 = vpop.f32.mrf.mxu0
    %1427 = vmatprep.mubr.f32.mxu0 0.0
    %1428 = vmatmul.mubr.f32.gmra.mxu0 %v964
    %v1429 = vpop.f32.mrf.mxu0
    %v1430 = vadd.f32 %v1355, %v1429
    %v1431 = vpop.f32.mrf.mxu0
    %1432 = vdwg.mxu0
    %v1433 = vld [vmem:[#allocation5 + $0x150] sm:$0xff]
    %v1434 = vld [vmem:[#allocation5 + $0x158] sm:$0xff]
    %v1436 = vsel %vm239, %v1269, 0
    %v1439 = vsel %vm239, %v1270, 0
    %1441 = vmatprep.subr.mxu0 0.0
    %1442 = vmatpush1.msra.mxu0 0.0
    %1443 = vmatprep.subr.mxu0 0.0
    %1444 = vmatpush1.msra.mxu0 0.0
    %1445 = vmatprep.subr.mxu0 0.0
    %1446 = vmatpush1.msra.mxu0 0.0
    %1447 = vmatprep.subr.mxu0 0.0
    %1448 = vmatpush1.msra.mxu0 0.0
    %1449 = vmatprep.subr.mxu0 0.0
    %1450 = vmatpush1.msra.mxu0 0.0
    %1451 = vmatprep.subr.mxu0 0.0
    %1452 = vmatpush1.msra.mxu0 0.0
    %1453 = vmatprep.subr.mxu0 0.0
    %1454 = vmatpush1.msra.mxu0 0.0
    %1455 = vmatprep.subr.mxu0 0.0
    %1456 = vmatpush1.msra.mxu0 0.0
    %1457 = vmatprep.subr.mxu0 0.0
    %1458 = vmatpush1.msra.mxu0 0.0
    %1459 = vmatprep.subr.mxu0 0.0
    %1460 = vmatpush1.msra.mxu0 0.0
    %1461 = vmatprep.subr.mxu0 0.0
    %1462 = vmatpush1.msra.mxu0 0.0
    %1463 = vmatprep.subr.mxu0 0.0
    %1464 = vmatpush1.msra.mxu0 0.0
    %1465 = vmatprep.subr.mxu0 0.0
    %1466 = vmatpush1.msra.mxu0 0.0
    %1467 = vmatprep.subr.mxu0 0.0
    %1468 = vmatpush1.msra.mxu0 0.0
    %1469 = vmatprep.subr.mxu0 0.0
    %1470 = vmatpush1.msra.mxu0 %v1434
    %1471 = vmatprep.subr.mxu0 0.0
    %1472 = vmatpush1.msra.mxu0 %v1433
    %1473 = vmatprep.subr.mxu0 0.0
    %1474 = vmatpush2.msra.mxu0 0.0
    %1475 = vmatprep.subr.mxu0 0.0
    %1476 = vmatpush2.msra.mxu0 0.0
    %1477 = vmatprep.subr.mxu0 0.0
    %1478 = vmatpush2.msra.mxu0 0.0
    %1479 = vmatprep.subr.mxu0 0.0
    %1480 = vmatpush2.msra.mxu0 0.0
    %1481 = vmatprep.subr.mxu0 0.0
    %1482 = vmatpush2.msra.mxu0 0.0
    %1483 = vmatprep.subr.mxu0 0.0
    %1484 = vmatpush2.msra.mxu0 0.0
    %1485 = vmatprep.subr.mxu0 0.0
    %1486 = vmatpush2.msra.mxu0 0.0
    %1487 = vmatprep.subr.mxu0 0.0
    %1488 = vmatpush2.msra.mxu0 0.0
    %1489 = vmatprep.subr.mxu0 0.0
    %1490 = vmatpush2.msra.mxu0 0.0
    %1491 = vmatprep.subr.mxu0 0.0
    %1492 = vmatpush2.msra.mxu0 0.0
    %1493 = vmatprep.subr.mxu0 0.0
    %1494 = vmatpush2.msra.mxu0 0.0
    %1495 = vmatprep.subr.mxu0 0.0
    %1496 = vmatpush2.msra.mxu0 0.0
    %1497 = vmatprep.subr.mxu0 0.0
    %1498 = vmatpush2.msra.mxu0 0.0
    %1499 = vmatprep.subr.mxu0 0.0
    %1500 = vmatpush2.msra.mxu0 0.0
    %1501 = vmatprep.subr.mxu0 0.0
    %1502 = vmatpush2.msra.mxu0 0.0
    %1503 = vmatprep.subr.mxu0 0.0
    %1504 = vmatpush2.msra.mxu0 0.0
    %1505 = vmatprep.mubr.f32.mxu0 0.0
    %1506 = vmatmul.mubr.f32.gmra.mxu0 %v1436
    %v1507 = vpop.f32.mrf.mxu0
    %v1508 = vadd.f32 0.0, %v1507
    %v1509 = vpop.f32.mrf.mxu0
    %1510 = vmatprep.mubr.f32.mxu0 0.0
    %1511 = vmatmul.mubr.f32.gmra.mxu0 %v1439
    %v1512 = vpop.f32.mrf.mxu0
    %v1513 = vadd.f32 0.0, %v1512
    %v1514 = vpop.f32.mrf.mxu0
    %1515 = vdwg.mxu0
    %v1516 = vadd.f32 %v1425, %v1508
    %v1517 = vadd.f32 %v1430, %v1513
    %v1518 = vld [vmem:[#allocation5 + $0x160] sm:$0xff]
    %v1519 = vld [vmem:[#allocation5 + $0x168] sm:$0xff]
    %v1521 = vsel %vm239, %v1271, 0
    %v1524 = vsel %vm239, %v1272, 0
    %1526 = vmatprep.subr.mxu0 0.0
    %1527 = vmatpush1.msra.mxu0 0.0
    %1528 = vmatprep.subr.mxu0 0.0
    %1529 = vmatpush1.msra.mxu0 0.0
    %1530 = vmatprep.subr.mxu0 0.0
    %1531 = vmatpush1.msra.mxu0 0.0
    %1532 = vmatprep.subr.mxu0 0.0
    %1533 = vmatpush1.msra.mxu0 0.0
    %1534 = vmatprep.subr.mxu0 0.0
    %1535 = vmatpush1.msra.mxu0 0.0
    %1536 = vmatprep.subr.mxu0 0.0
    %1537 = vmatpush1.msra.mxu0 0.0
    %1538 = vmatprep.subr.mxu0 0.0
    %1539 = vmatpush1.msra.mxu0 0.0
    %1540 = vmatprep.subr.mxu0 0.0
    %1541 = vmatpush1.msra.mxu0 0.0
    %1542 = vmatprep.subr.mxu0 0.0
    %1543 = vmatpush1.msra.mxu0 0.0
    %1544 = vmatprep.subr.mxu0 0.0
    %1545 = vmatpush1.msra.mxu0 0.0
    %1546 = vmatprep.subr.mxu0 0.0
    %1547 = vmatpush1.msra.mxu0 0.0
    %1548 = vmatprep.subr.mxu0 0.0
    %1549 = vmatpush1.msra.mxu0 0.0
    %1550 = vmatprep.subr.mxu0 0.0
    %1551 = vmatpush1.msra.mxu0 0.0
    %1552 = vmatprep.subr.mxu0 0.0
    %1553 = vmatpush1.msra.mxu0 0.0
    %1554 = vmatprep.subr.mxu0 0.0
    %1555 = vmatpush1.msra.mxu0 %v1519
    %1556 = vmatprep.subr.mxu0 0.0
    %1557 = vmatpush1.msra.mxu0 %v1518
    %1558 = vmatprep.subr.mxu0 0.0
    %1559 = vmatpush2.msra.mxu0 0.0
    %1560 = vmatprep.subr.mxu0 0.0
    %1561 = vmatpush2.msra.mxu0 0.0
    %1562 = vmatprep.subr.mxu0 0.0
    %1563 = vmatpush2.msra.mxu0 0.0
    %1564 = vmatprep.subr.mxu0 0.0
    %1565 = vmatpush2.msra.mxu0 0.0
    %1566 = vmatprep.subr.mxu0 0.0
    %1567 = vmatpush2.msra.mxu0 0.0
    %1568 = vmatprep.subr.mxu0 0.0
    %1569 = vmatpush2.msra.mxu0 0.0
    %1570 = vmatprep.subr.mxu0 0.0
    %1571 = vmatpush2.msra.mxu0 0.0
    %1572 = vmatprep.subr.mxu0 0.0
    %1573 = vmatpush2.msra.mxu0 0.0
    %1574 = vmatprep.subr.mxu0 0.0
    %1575 = vmatpush2.msra.mxu0 0.0
    %1576 = vmatprep.subr.mxu0 0.0
    %1577 = vmatpush2.msra.mxu0 0.0
    %1578 = vmatprep.subr.mxu0 0.0
    %1579 = vmatpush2.msra.mxu0 0.0
    %1580 = vmatprep.subr.mxu0 0.0
    %1581 = vmatpush2.msra.mxu0 0.0
    %1582 = vmatprep.subr.mxu0 0.0
    %1583 = vmatpush2.msra.mxu0 0.0
    %1584 = vmatprep.subr.mxu0 0.0
    %1585 = vmatpush2.msra.mxu0 0.0
    %1586 = vmatprep.subr.mxu0 0.0
    %1587 = vmatpush2.msra.mxu0 0.0
    %1588 = vmatprep.subr.mxu0 0.0
    %1589 = vmatpush2.msra.mxu0 0.0
    %1590 = vmatprep.mubr.f32.mxu0 0.0
    %1591 = vmatmul.mubr.f32.gmra.mxu0 %v1521
    %v1592 = vpop.f32.mrf.mxu0
    %v1593 = vadd.f32 0.0, %v1592
    %v1594 = vpop.f32.mrf.mxu0
    %1595 = vmatprep.mubr.f32.mxu0 0.0
    %1596 = vmatmul.mubr.f32.gmra.mxu0 %v1524
    %v1597 = vpop.f32.mrf.mxu0
    %v1598 = vadd.f32 0.0, %v1597
    %v1599 = vpop.f32.mrf.mxu0
    %1600 = vdwg.mxu0
    %v1601 = vadd.f32 %v1516, %v1593
    %v1602 = vadd.f32 %v1517, %v1598
    %v1603 = vld [vmem:[#allocation5 + $0x170] sm:$0xff]
    %v1604 = vld [vmem:[#allocation5 + $0x178] sm:$0xff]
    %v1606 = vsel %vm239, %v1261, 0
    %v1609 = vsel %vm239, %v1268, 0
    %1611 = vmatprep.subr.mxu0 0.0
    %1612 = vmatpush1.msra.mxu0 0.0
    %1613 = vmatprep.subr.mxu0 0.0
    %1614 = vmatpush1.msra.mxu0 0.0
    %1615 = vmatprep.subr.mxu0 0.0
    %1616 = vmatpush1.msra.mxu0 0.0
    %1617 = vmatprep.subr.mxu0 0.0
    %1618 = vmatpush1.msra.mxu0 0.0
    %1619 = vmatprep.subr.mxu0 0.0
    %1620 = vmatpush1.msra.mxu0 0.0
    %1621 = vmatprep.subr.mxu0 0.0
    %1622 = vmatpush1.msra.mxu0 0.0
    %1623 = vmatprep.subr.mxu0 0.0
    %1624 = vmatpush1.msra.mxu0 0.0
    %1625 = vmatprep.subr.mxu0 0.0
    %1626 = vmatpush1.msra.mxu0 0.0
    %1627 = vmatprep.subr.mxu0 0.0
    %1628 = vmatpush1.msra.mxu0 0.0
    %1629 = vmatprep.subr.mxu0 0.0
    %1630 = vmatpush1.msra.mxu0 0.0
    %1631 = vmatprep.subr.mxu0 0.0
    %1632 = vmatpush1.msra.mxu0 0.0
    %1633 = vmatprep.subr.mxu0 0.0
    %1634 = vmatpush1.msra.mxu0 0.0
    %1635 = vmatprep.subr.mxu0 0.0
    %1636 = vmatpush1.msra.mxu0 0.0
    %1637 = vmatprep.subr.mxu0 0.0
    %1638 = vmatpush1.msra.mxu0 0.0
    %1639 = vmatprep.subr.mxu0 0.0
    %1640 = vmatpush1.msra.mxu0 %v1604
    %1641 = vmatprep.subr.mxu0 0.0
    %1642 = vmatpush1.msra.mxu0 %v1603
    %1643 = vmatprep.subr.mxu0 0.0
    %1644 = vmatpush2.msra.mxu0 0.0
    %1645 = vmatprep.subr.mxu0 0.0
    %1646 = vmatpush2.msra.mxu0 0.0
    %1647 = vmatprep.subr.mxu0 0.0
    %1648 = vmatpush2.msra.mxu0 0.0
    %1649 = vmatprep.subr.mxu0 0.0
    %1650 = vmatpush2.msra.mxu0 0.0
    %1651 = vmatprep.subr.mxu0 0.0
    %1652 = vmatpush2.msra.mxu0 0.0
    %1653 = vmatprep.subr.mxu0 0.0
    %1654 = vmatpush2.msra.mxu0 0.0
    %1655 = vmatprep.subr.mxu0 0.0
    %1656 = vmatpush2.msra.mxu0 0.0
    %1657 = vmatprep.subr.mxu0 0.0
    %1658 = vmatpush2.msra.mxu0 0.0
    %1659 = vmatprep.subr.mxu0 0.0
    %1660 = vmatpush2.msra.mxu0 0.0
    %1661 = vmatprep.subr.mxu0 0.0
    %1662 = vmatpush2.msra.mxu0 0.0
    %1663 = vmatprep.subr.mxu0 0.0
    %1664 = vmatpush2.msra.mxu0 0.0
    %1665 = vmatprep.subr.mxu0 0.0
    %1666 = vmatpush2.msra.mxu0 0.0
    %1667 = vmatprep.subr.mxu0 0.0
    %1668 = vmatpush2.msra.mxu0 0.0
    %1669 = vmatprep.subr.mxu0 0.0
    %1670 = vmatpush2.msra.mxu0 0.0
    %1671 = vmatprep.subr.mxu0 0.0
    %1672 = vmatpush2.msra.mxu0 0.0
    %1673 = vmatprep.subr.mxu0 0.0
    %1674 = vmatpush2.msra.mxu0 0.0
    %1675 = vmatprep.mubr.f32.mxu0 0.0
    %1676 = vmatmul.mubr.f32.gmra.mxu0 %v1606
    %v1677 = vpop.f32.mrf.mxu0
    %v1678 = vadd.f32 0.0, %v1677
    %v1679 = vpop.f32.mrf.mxu0
    %1680 = vmatprep.mubr.f32.mxu0 0.0
    %1681 = vmatmul.mubr.f32.gmra.mxu0 %v1609
    %v1682 = vpop.f32.mrf.mxu0
    %v1683 = vadd.f32 0.0, %v1682
    %v1684 = vpop.f32.mrf.mxu0
    %1685 = vdwg.mxu0
    %v1686 = vadd.f32 %v1601, %v1678
    %v1687 = vadd.f32 %v1602, %v1683
    %1690 = vrot.lane.b32.xlu0 %v1686, 120
    %v1691 = vpop.permute.xlu0 %1690
    %1692 = vrot.lane.b32.xlu0 %v1687, 120
    %v1693 = vpop.permute.xlu0 %1692
    %v1696 = vmul.f32 %v63, %v1691
    %v1697 = vmul.f32 %v64, %v1693
    %v1698 = vadd.f32 %v1686, %v1696
    %v1699 = vadd.f32 %v1687, %v1697
    %1700 = vrot.lane.b32.xlu0 %v1686, 112
    %v1701 = vpop.permute.xlu0 %1700
    %1702 = vrot.lane.b32.xlu0 %v1687, 112
    %v1703 = vpop.permute.xlu0 %1702
    %v1706 = vmul.f32 %v66, %v1701
    %v1707 = vmul.f32 %v68, %v1703
    %v1708 = vadd.f32 %v1698, %v1706
    %v1709 = vadd.f32 %v1699, %v1707
    %v1710 = vld [vmem:[#allocation5 + $0x180] sm:$0x1]
    %v1711 = vlaneseq
    %v1712 = vshrl.u32 %v1711, 7
    %v1713 = vsub.s32 0, %v1712
    %v1714 = vrot.slane %v1710, %v1713
    %v1715 = vadd.f32 %v1708, %v1714
    %v1716 = vadd.f32 %v1709, %v1714
    %v1717 = vld [vmem:[#allocation5 + $0x188] sm:$0xff]
    %v1718 = vld [vmem:[#allocation5 + $0x190] sm:$0x1]
    %v1719 = vlaneseq
    %v1720 = vshrl.u32 %v1719, 7
    %v1721 = vsub.s32 0, %v1720
    %v1722 = vrot.slane %v1718, %v1721
    %vm1723 = vcmask 64512
    %v1725 = vsel %vm1723, %v1715, 0
    %v1728 = vsel %vm1723, %v1716, 0
    %1730 = vmatprep.subr.mxu0 0.0
    %1731 = vmatpush1.msra.mxu0 0.0
    %1732 = vmatprep.subr.mxu0 0.0
    %1733 = vmatpush1.msra.mxu0 0.0
    %1734 = vmatprep.subr.mxu0 0.0
    %1735 = vmatpush1.msra.mxu0 0.0
    %1736 = vmatprep.subr.mxu0 0.0
    %1737 = vmatpush1.msra.mxu0 0.0
    %1738 = vmatprep.subr.mxu0 0.0
    %1739 = vmatpush1.msra.mxu0 0.0
    %1740 = vmatprep.subr.mxu0 0.0
    %1741 = vmatpush1.msra.mxu0 0.0
    %1742 = vmatprep.subr.mxu0 0.0
    %1743 = vmatpush1.msra.mxu0 0.0
    %1744 = vmatprep.subr.mxu0 0.0
    %1745 = vmatpush1.msra.mxu0 0.0
    %1746 = vmatprep.subr.mxu0 0.0
    %1747 = vmatpush1.msra.mxu0 0.0
    %1748 = vmatprep.subr.mxu0 0.0
    %1749 = vmatpush1.msra.mxu0 0.0
    %1750 = vmatprep.subr.mxu0 0.0
    %1751 = vmatpush1.msra.mxu0 0.0
    %1752 = vmatprep.subr.mxu0 0.0
    %1753 = vmatpush1.msra.mxu0 0.0
    %1754 = vmatprep.subr.mxu0 0.0
    %1755 = vmatpush1.msra.mxu0 0.0
    %1756 = vmatprep.subr.mxu0 0.0
    %1757 = vmatpush1.msra.mxu0 0.0
    %1758 = vmatprep.subr.mxu0 0.0
    %1759 = vmatpush1.msra.mxu0 0.0
    %1760 = vmatprep.subr.mxu0 0.0
    %1761 = vmatpush1.msra.mxu0 %v1717
    %1762 = vmatprep.subr.mxu0 0.0
    %1763 = vmatpush2.msra.mxu0 0.0
    %1764 = vmatprep.subr.mxu0 0.0
    %1765 = vmatpush2.msra.mxu0 0.0
    %1766 = vmatprep.subr.mxu0 0.0
    %1767 = vmatpush2.msra.mxu0 0.0
    %1768 = vmatprep.subr.mxu0 0.0
    %1769 = vmatpush2.msra.mxu0 0.0
    %1770 = vmatprep.subr.mxu0 0.0
    %1771 = vmatpush2.msra.mxu0 0.0
    %1772 = vmatprep.subr.mxu0 0.0
    %1773 = vmatpush2.msra.mxu0 0.0
    %1774 = vmatprep.subr.mxu0 0.0
    %1775 = vmatpush2.msra.mxu0 0.0
    %1776 = vmatprep.subr.mxu0 0.0
    %1777 = vmatpush2.msra.mxu0 0.0
    %1778 = vmatprep.subr.mxu0 0.0
    %1779 = vmatpush2.msra.mxu0 0.0
    %1780 = vmatprep.subr.mxu0 0.0
    %1781 = vmatpush2.msra.mxu0 0.0
    %1782 = vmatprep.subr.mxu0 0.0
    %1783 = vmatpush2.msra.mxu0 0.0
    %1784 = vmatprep.subr.mxu0 0.0
    %1785 = vmatpush2.msra.mxu0 0.0
    %1786 = vmatprep.subr.mxu0 0.0
    %1787 = vmatpush2.msra.mxu0 0.0
    %1788 = vmatprep.subr.mxu0 0.0
    %1789 = vmatpush2.msra.mxu0 0.0
    %1790 = vmatprep.subr.mxu0 0.0
    %1791 = vmatpush2.msra.mxu0 0.0
    %1792 = vmatprep.subr.mxu0 0.0
    %1793 = vmatpush2.msra.mxu0 0.0
    %1794 = vmatprep.mubr.f32.mxu0 0.0
    %1795 = vmatmul.mubr.f32.gmra.mxu0 %v1725
    %v1796 = vpop.f32.mrf.mxu0
    %v1797 = vadd.f32 %v1722, %v1796
    %v1798 = vpop.f32.mrf.mxu0
    %1799 = vmatprep.mubr.f32.mxu0 0.0
    %1800 = vmatmul.mubr.f32.gmra.mxu0 %v1728
    %v1801 = vpop.f32.mrf.mxu0
    %v1802 = vadd.f32 %v1722, %v1801
    %v1803 = vpop.f32.mrf.mxu0
    %1804 = vdwg.mxu0
    %v1805 = vmax.f32 %v1797, 0.0
    %v1806 = vmax.f32 %v1802, 0.0
    %v1808 = vsel %vm239, %v48, 0
    %1810 = vmatprep.subr.mxu0 0.0
    %1811 = vmatpush1.msra.mxu0 0.0
    %1812 = vmatprep.subr.mxu0 0.0
    %1813 = vmatpush1.msra.mxu0 0.0
    %1814 = vmatprep.subr.mxu0 0.0
    %1815 = vmatpush1.msra.mxu0 0.0
    %1816 = vmatprep.subr.mxu0 0.0
    %1817 = vmatpush1.msra.mxu0 0.0
    %1818 = vmatprep.subr.mxu0 0.0
    %1819 = vmatpush1.msra.mxu0 0.0
    %1820 = vmatprep.subr.mxu0 0.0
    %1821 = vmatpush1.msra.mxu0 0.0
    %1822 = vmatprep.subr.mxu0 0.0
    %1823 = vmatpush1.msra.mxu0 0.0
    %1824 = vmatprep.subr.mxu0 0.0
    %1825 = vmatpush1.msra.mxu0 0.0
    %1826 = vmatprep.subr.mxu0 0.0
    %1827 = vmatpush1.msra.mxu0 0.0
    %1828 = vmatprep.subr.mxu0 0.0
    %1829 = vmatpush1.msra.mxu0 0.0
    %1830 = vmatprep.subr.mxu0 0.0
    %1831 = vmatpush1.msra.mxu0 0.0
    %1832 = vmatprep.subr.mxu0 0.0
    %1833 = vmatpush1.msra.mxu0 0.0
    %1834 = vmatprep.subr.mxu0 0.0
    %1835 = vmatpush1.msra.mxu0 0.0
    %1836 = vmatprep.subr.mxu0 0.0
    %1837 = vmatpush1.msra.mxu0 0.0
    %1838 = vmatprep.subr.mxu0 0.0
    %1839 = vmatpush1.msra.mxu0 %v1806
    %1840 = vmatprep.subr.mxu0 0.0
    %1841 = vmatpush1.msra.mxu0 %v1805
    %1842 = vmatprep.subr.mxu0 0.0
    %1843 = vmatpush2.msra.mxu0 0.0
    %1844 = vmatprep.subr.mxu0 0.0
    %1845 = vmatpush2.msra.mxu0 0.0
    %1846 = vmatprep.subr.mxu0 0.0
    %1847 = vmatpush2.msra.mxu0 0.0
    %1848 = vmatprep.subr.mxu0 0.0
    %1849 = vmatpush2.msra.mxu0 0.0
    %1850 = vmatprep.subr.mxu0 0.0
    %1851 = vmatpush2.msra.mxu0 0.0
    %1852 = vmatprep.subr.mxu0 0.0
    %1853 = vmatpush2.msra.mxu0 0.0
    %1854 = vmatprep.subr.mxu0 0.0
    %1855 = vmatpush2.msra.mxu0 0.0
    %1856 = vmatprep.subr.mxu0 0.0
    %1857 = vmatpush2.msra.mxu0 0.0
    %1858 = vmatprep.subr.mxu0 0.0
    %1859 = vmatpush2.msra.mxu0 0.0
    %1860 = vmatprep.subr.mxu0 0.0
    %1861 = vmatpush2.msra.mxu0 0.0
    %1862 = vmatprep.subr.mxu0 0.0
    %1863 = vmatpush2.msra.mxu0 0.0
    %1864 = vmatprep.subr.mxu0 0.0
    %1865 = vmatpush2.msra.mxu0 0.0
    %1866 = vmatprep.subr.mxu0 0.0
    %1867 = vmatpush2.msra.mxu0 0.0
    %1868 = vmatprep.subr.mxu0 0.0
    %1869 = vmatpush2.msra.mxu0 0.0
    %1870 = vmatprep.subr.mxu0 0.0
    %1871 = vmatpush2.msra.mxu0 0.0
    %1872 = vmatprep.subr.mxu0 0.0
    %1873 = vmatpush2.msra.mxu0 0.0
    %1874 = vmatprep.mubr.f32.mxu0 0.0
    %1875 = vmatmul.mubr.f32.gmra.mxu0 %v1808
    %v1876 = vpop.f32.mrf.mxu0
    %v1877 = vadd.f32 0.0, %v1876
    %v1878 = vpop.f32.mrf.mxu0
    %1879 = vdwg.mxu0
    %v1880 = vld [vmem:[#allocation5 + $0x198] sm:$0xff]
    %v1881 = vld [vmem:[#allocation5 + $0x1a0] sm:$0x1]
    %v1882 = vlaneseq
    %v1883 = vshrl.u32 %v1882, 7
    %v1884 = vsub.s32 0, %v1883
    %v1885 = vrot.slane %v1881, %v1884
    %v1887 = vsel %vm1723, %v1877, 0
    %1889 = vmatprep.subr.mxu0 0.0
    %1890 = vmatpush1.msra.mxu0 0.0
    %1891 = vmatprep.subr.mxu0 0.0
    %1892 = vmatpush1.msra.mxu0 0.0
    %1893 = vmatprep.subr.mxu0 0.0
    %1894 = vmatpush1.msra.mxu0 0.0
    %1895 = vmatprep.subr.mxu0 0.0
    %1896 = vmatpush1.msra.mxu0 0.0
    %1897 = vmatprep.subr.mxu0 0.0
    %1898 = vmatpush1.msra.mxu0 0.0
    %1899 = vmatprep.subr.mxu0 0.0
    %1900 = vmatpush1.msra.mxu0 0.0
    %1901 = vmatprep.subr.mxu0 0.0
    %1902 = vmatpush1.msra.mxu0 0.0
    %1903 = vmatprep.subr.mxu0 0.0
    %1904 = vmatpush1.msra.mxu0 0.0
    %1905 = vmatprep.subr.mxu0 0.0
    %1906 = vmatpush1.msra.mxu0 0.0
    %1907 = vmatprep.subr.mxu0 0.0
    %1908 = vmatpush1.msra.mxu0 0.0
    %1909 = vmatprep.subr.mxu0 0.0
    %1910 = vmatpush1.msra.mxu0 0.0
    %1911 = vmatprep.subr.mxu0 0.0
    %1912 = vmatpush1.msra.mxu0 0.0
    %1913 = vmatprep.subr.mxu0 0.0
    %1914 = vmatpush1.msra.mxu0 0.0
    %1915 = vmatprep.subr.mxu0 0.0
    %1916 = vmatpush1.msra.mxu0 0.0
    %1917 = vmatprep.subr.mxu0 0.0
    %1918 = vmatpush1.msra.mxu0 0.0
    %1919 = vmatprep.subr.mxu0 0.0
    %1920 = vmatpush1.msra.mxu0 %v1880
    %1921 = vmatprep.subr.mxu0 0.0
    %1922 = vmatpush2.msra.mxu0 0.0
    %1923 = vmatprep.subr.mxu0 0.0
    %1924 = vmatpush2.msra.mxu0 0.0
    %1925 = vmatprep.subr.mxu0 0.0
    %1926 = vmatpush2.msra.mxu0 0.0
    %1927 = vmatprep.subr.mxu0 0.0
    %1928 = vmatpush2.msra.mxu0 0.0
    %1929 = vmatprep.subr.mxu0 0.0
    %1930 = vmatpush2.msra.mxu0 0.0
    %1931 = vmatprep.subr.mxu0 0.0
    %1932 = vmatpush2.msra.mxu0 0.0
    %1933 = vmatprep.subr.mxu0 0.0
    %1934 = vmatpush2.msra.mxu0 0.0
    %1935 = vmatprep.subr.mxu0 0.0
    %1936 = vmatpush2.msra.mxu0 0.0
    %1937 = vmatprep.subr.mxu0 0.0
    %1938 = vmatpush2.msra.mxu0 0.0
    %1939 = vmatprep.subr.mxu0 0.0
    %1940 = vmatpush2.msra.mxu0 0.0
    %1941 = vmatprep.subr.mxu0 0.0
    %1942 = vmatpush2.msra.mxu0 0.0
    %1943 = vmatprep.subr.mxu0 0.0
    %1944 = vmatpush2.msra.mxu0 0.0
    %1945 = vmatprep.subr.mxu0 0.0
    %1946 = vmatpush2.msra.mxu0 0.0
    %1947 = vmatprep.subr.mxu0 0.0
    %1948 = vmatpush2.msra.mxu0 0.0
    %1949 = vmatprep.subr.mxu0 0.0
    %1950 = vmatpush2.msra.mxu0 0.0
    %1951 = vmatprep.subr.mxu0 0.0
    %1952 = vmatpush2.msra.mxu0 0.0
    %1953 = vmatprep.mubr.f32.mxu0 0.0
    %1954 = vmatmul.mubr.f32.gmra.mxu0 %v1887
    %v1955 = vpop.f32.mrf.mxu0
    %v1956 = vadd.f32 %v1885, %v1955
    %v1957 = vpop.f32.mrf.mxu0
    %1958 = vdwg.mxu0
    %1960 = vrot.lane.b32.xlu0 %v1956, 127
    %v1961 = vpop.permute.xlu0 %1960
    %v1963 = vmax.f32 %v1956, %v1961
    %v1964 = vsub.f32 %v1956, %v1963
    %v1965 = vmul.f32 %v1964, 1.442695
    %v1966 = vpow.pop %v1965
    %1968 = vrot.lane.b32.xlu0 %v1963, 1
    %v1969 = vpop.permute.xlu0 %1968
    %v1971 = vsub.f32 %v1956, %v1969
    %v1972 = vmul.f32 %v1971, 1.442695
    %v1973 = vpow.pop %v1972
    %1975 = vrot.lane.b32.xlu0 %v1973, 127
    %v1976 = vpop.permute.xlu0 %1975
    %v1978 = vadd.f32 %v1966, %v1976
    %v1979 = vlog2.pop %v1978
    %v1980 = vmul.f32 %v1979, 0.6931472
    %v1981 = vadd.f32 %v1963, %v1980
    %1983 = vset.pattern.permute.xlu0 0
    %1984 = vperm.xlu0 %1983, %v1981
    %v1985 = vpop.permute.xlu0 %1984
    %v1987 = vsub.f32 %v1956, %v1985
    %1988 = vst [vmem:[#allocation7] sm:$0xff] %v1987
    // Predicated region
    $region18: #{tpu_custom_call.1} parent=1 // pred_check
      _
    $region19: #{tpu_custom_call.1} parent=1 // pred_check_branch
      %1990 = sbr.rel (0) target = $region21
    $region20: #{tpu_custom_call.1} parent=1 // pred_region
      %s1992 = ssub.s32 128, 128
      %1993 = vsyncadd [#allocation4], %s1992
      %s1995 = sshll.u32 [#allocation7], 4
      %s1996 = int_to_ptr.vmem [resolvable:$true] %s1995
      %1998 = dma.vmem_to_hbm [thread:$0]  %s1996, 128, %s2, [#allocation4]
    $region21: #{tpu_custom_call.1} parent=1 // pred_fallthru
      _
    // Predicated region
    $region22: #{tpu_custom_call.1} parent=1 // pred_check
      _
    $region23: #{tpu_custom_call.1} parent=1 // pred_check_branch
      %2000 = sbr.rel (0) target = $region25
    $region24: #{tpu_custom_call.1} parent=1 // pred_region
      %2001 = dma.done [#allocation4], 128
    $region25: #{tpu_custom_call.1} parent=1 // pred_fallthru
      _
    %2002 = vsyncpa [#allocation3], 1
    %2003 = vsyncpa [#allocation6], 1
    %2004 = vsyncpa [#allocation4], 1

</llo_original>
